<compile_context>
chip_gen: v5e
topology: v5e:2x2
jax: 0.10.0
libtpu: 0.0.40
codegen_flags: <defaults>
</compile_context>

<pallas_src>
import jax
import jax.numpy as jnp
import numpy as np
from jax.experimental import pallas as pl
from jax.experimental.pallas import tpu as pltpu


def _round_up(a, m):
    return (a + m - 1) // m * m


def _softmax_lastdim(logits):
    m = jnp.max(logits, axis=-1, keepdims=True)
    e = jnp.exp(logits - m)
    denom = jnp.sum(e, axis=-1, keepdims=True)
    return e * pl.reciprocal(denom, approx=True)


def cnn_lstm_cbam_kernel(
    x_ref,      # (TB, 4, W)   input tile, lane-dense on W
    wconv_ref,  # (4, 16, 1)   conv1d weight, (in, out, 1)
    bconv_ref,  # (16, 1)
    wse_ref,    # (W, W)       se_fc weight, (in, out)
    bse_ref,    # (1, W)
    whw_ref,    # (16, 16)     hw_fc weight, (in, out)
    bhw_ref,    # (1, 16)
    wi_ref,     # (16, 2H)     LSTM input-gate weight, cols = [fwd | bwd]
    bi_ref,     # (1, 2H)
    wg_ref,     # (16, 2H)     cell-gate weight
    bg_ref,     # (1, 2H)
    wo_ref,     # (16, 2H)     output-gate weight
    bo_ref,     # (1, 2H)
    wcls_ref,   # (2H, 1)      classifier weight
    bcls_ref,   # (1, 1)
    out_ref,    # (TB, 1)
):
    x = x_ref[...]                                                     # (TB, 4, W)
    wconv = wconv_ref[...]                                             # (4, 16, 1)

    # --- Conv1d(kernel_size=1) as a 4-term FMA chain + Sigmoid -----------------
    acc = x[:, 0:1, :] * wconv[0:1]                                    # (TB, 16, W)
    for c in range(1, 4):
        acc = acc + x[:, c:c + 1, :] * wconv[c:c + 1]
    y = jax.nn.sigmoid(acc + bconv_ref[...][None, :, :])               # (TB, 16, W)

    # --- SE: mean over 16 channels (sublane reduce) -> Linear(W,W) -> softmax --
    avg_w = jnp.mean(y, axis=1)                                        # (TB, W)
    se_logits = jnp.dot(avg_w, wse_ref[...],
                        preferred_element_type=jnp.float32) + bse_ref[...]
    se_attn = _softmax_lastdim(se_logits)                              # (TB, W)
    y = y * se_attn[:, None, :]                                        # scale along W

    # --- HW: mean over window (lane reduce) -> Linear(16,16) -> softmax --------
    avg_c = jnp.mean(y, axis=2)                                        # (TB, 16)
    hw_logits = jnp.dot(avg_c, whw_ref[...],
                        preferred_element_type=jnp.float32) + bhw_ref[...]
    hw_attn = _softmax_lastdim(hw_logits)                              # (TB, 16)

    # --- MaxPool1d(window); hw_attn > 0 so it commutes with the max ------------
    # TODO(synk): Dropout(p=0.01) is eval-mode identity (no RNG mask).
    pooled = jnp.max(y, axis=2) * hw_attn                              # (TB, 16)

    # --- Single-step bidirectional LSTM (h0=c0=0 => only W_ih + biases matter) -
    # Forget gate is dead (multiplies c0=0).  Columns are [fwd | bwd].
    i = jax.nn.sigmoid(jnp.dot(pooled, wi_ref[...],
                               preferred_element_type=jnp.float32) + bi_ref[...])
    g = jnp.tanh(jnp.dot(pooled, wg_ref[...],
                         preferred_element_type=jnp.float32) + bg_ref[...])
    o = jax.nn.sigmoid(jnp.dot(pooled, wo_ref[...],
                               preferred_element_type=jnp.float32) + bo_ref[...])
    h = jnp.tanh(o * jnp.tanh(i * g))                                  # (TB, 2H)

    # --- Classifier + tanh ------------------------------------------------------
    logits = jnp.dot(h, wcls_ref[...],
                     preferred_element_type=jnp.float32) + bcls_ref[...]
    out_ref[...] = jnp.tanh(logits)                                    # (TB, 1)


# ----------------------------------------------------------------------------- #
# Parameters (torch-shaped) and host-side repacking into kernel layouts.
# ----------------------------------------------------------------------------- #
def init_torch_params(key, window, lstm_units):
    H = lstm_units
    ks = jax.random.split(key, 14)
    s = 0.1
    tp = {
        'conv_w': s * jax.random.normal(ks[0], (16, 4), jnp.float32),   # (out,in), k=1
        'conv_b': s * jax.random.normal(ks[1], (16,), jnp.float32),
        'se_w':   s * jax.random.normal(ks[2], (window, window), jnp.float32),
        'se_b':   s * jax.random.normal(ks[3], (window,), jnp.float32),
        'hw_w':   s * jax.random.normal(ks[4], (16, 16), jnp.float32),
        'hw_b':   s * jax.random.normal(ks[5], (16,), jnp.float32),
        'wih_f':  s * jax.random.normal(ks[6], (4 * H, 16), jnp.float32),
        'bih_f':  s * jax.random.normal(ks[7], (4 * H,), jnp.float32),
        'bhh_f':  s * jax.random.normal(ks[8], (4 * H,), jnp.float32),
        'wih_b':  s * jax.random.normal(ks[9], (4 * H, 16), jnp.float32),
        'bih_b':  s * jax.random.normal(ks[10], (4 * H,), jnp.float32),
        'bhh_b':  s * jax.random.normal(ks[11], (4 * H,), jnp.float32),
        'cls_w':  s * jax.random.normal(ks[12], (1, 2 * H), jnp.float32),
        'cls_b':  s * jax.random.normal(ks[13], (1,), jnp.float32),
    }
    return tp


def pack_params(tp):
    """Host-side transposes / gate fusion -> kernel-ready layouts."""
    H = tp['wih_f'].shape[0] // 4

    def gate(w, b_ih, b_hh, k):  # k: 0=i, 2=g, 3=o (PyTorch gate order i,f,g,o)
        return w[k * H:(k + 1) * H].T, (b_ih + b_hh)[k * H:(k + 1) * H]

    wi_f, bi_f = gate(tp['wih_f'], tp['bih_f'], tp['bhh_f'], 0)
    wg_f, bg_f = gate(tp['wih_f'], tp['bih_f'], tp['bhh_f'], 2)
    wo_f, bo_f = gate(tp['wih_f'], tp['bih_f'], tp['bhh_f'], 3)
    wi_b, bi_b = gate(tp['wih_b'], tp['bih_b'], tp['bhh_b'], 0)
    wg_b, bg_b = gate(tp['wih_b'], tp['bih_b'], tp['bhh_b'], 2)
    wo_b, bo_b = gate(tp['wih_b'], tp['bih_b'], tp['bhh_b'], 3)

    return dict(
        wconv=tp['conv_w'].T.reshape(4, 16, 1),         # (in, out, 1)
        bconv=tp['conv_b'].reshape(16, 1),
        wse=tp['se_w'].T,                               # (in, out)
        bse=tp['se_b'].reshape(1, -1),
        whw=tp['hw_w'].T,                               # (in, out)
        bhw=tp['hw_b'].reshape(1, -1),
        w_i=jnp.concatenate([wi_f, wi_b], axis=1),      # (16, 2H), [fwd | bwd]
        b_i=jnp.concatenate([bi_f, bi_b]).reshape(1, -1),
        w_g=jnp.concatenate([wg_f, wg_b], axis=1),
        b_g=jnp.concatenate([bg_f, bg_b]).reshape(1, -1),
        w_o=jnp.concatenate([wo_f, wo_b], axis=1),
        b_o=jnp.concatenate([bo_f, bo_b]).reshape(1, -1),
        wcls=tp['cls_w'].T,                             # (2H, 1)
        bcls=tp['cls_b'].reshape(1, 1),
    )


# ----------------------------------------------------------------------------- #
# Pallas wrapper: batch-tiled grid, resident weights, cost estimate.
# ----------------------------------------------------------------------------- #
def cnn_lstm_cbam(x, kp, *, block_b=128):
    B, W, C = x.shape
    assert C == 4, "module expects dim=4 input features"
    H2 = kp['w_i'].shape[1]                              # 2 * lstm_units

    # PyTorch module does x.transpose(-1,-2) first; do it on the host so the
    # kernel sees the lane-dense (B, 4, W) layout.
    xt = jnp.swapaxes(x, 1, 2)                           # (B, 4, W)

    TB = min(block_b, _round_up(B, 8))
    Bp = _round_up(B, TB)
    if Bp != B:
        xt = jnp.pad(xt, ((0, Bp - B), (0, 0), (0, 0)))
    grid = (Bp // TB,)

    args = (xt, kp['wconv'], kp['bconv'], kp['wse'], kp['bse'], kp['whw'],
            kp['bhw'], kp['w_i'], kp['b_i'], kp['w_g'], kp['b_g'], kp['w_o'],
            kp['b_o'], kp['wcls'], kp['bcls'])

    def resident(shape):                                  # weight stays in VMEM
        nd = len(shape)
        return pl.BlockSpec(shape, lambda i, _nd=nd: (0,) * _nd)

    in_specs = ([pl.BlockSpec((TB, 4, W), lambda i: (i, 0, 0))]
                + [resident(a.shape) for a in args[1:]])
    out_specs = pl.BlockSpec((TB, 1), lambda i: (i, 0))

    weight_bytes = sum(int(a.size) * 4 for a in args[1:])
    cost = pl.CostEstimate(
        flops=int(Bp * (2 * 4 * 16 * W          # conv FMA chain
                        + 2 * W * W             # SE matmul
                        + 2 * 16 * 16           # HW matmul
                        + 2 * 16 * 3 * H2       # fused LSTM gate matmuls
                        + 2 * H2                # classifier
                        + 20 * 16 * W)),        # elementwise chain (approx)
        transcendentals=int(Bp * (16 * W + W + 16 + 5 * H2 + 1)),
        bytes_accessed=int(Bp * 4 * W * 4 + Bp * 4 + weight_bytes),
    )

    out = pl.pallas_call(
        cnn_lstm_cbam_kernel,
        out_shape=jax.ShapeDtypeStruct((Bp, 1), jnp.float32),
        grid_spec=pltpu.PrefetchScalarGridSpec(
            num_scalar_prefetch=0,
            grid=grid,
            in_specs=in_specs,
            out_specs=out_specs,
        ),
        compiler_params=pltpu.CompilerParams(
            dimension_semantics=("parallel",),           # v7x: shard batch over 2 TCs
            vmem_limit_bytes=48 * 1024 * 1024,           # fits v7x 64 MiB / v5e 128 MiB
        ),
        cost_estimate=cost,
    )(*args)
    return out[:B]


# ----------------------------------------------------------------------------- #
# Pure-JAX reference (mirrors the PyTorch forward exactly; h0 = c0 = 0).
# ----------------------------------------------------------------------------- #
def reference(x, tp):
    H = tp['wih_f'].shape[0] // 4
    xt = jnp.swapaxes(x, 1, 2)                                          # (B, 4, W)
    y = jax.nn.sigmoid(jnp.einsum('dc,bcw->bdw', tp['conv_w'], xt)
                       + tp['conv_b'][None, :, None])                   # (B,16,W)
    avg = y.mean(axis=1)                                                # (B, W)
    se = jax.nn.softmax(avg @ tp['se_w'].T + tp['se_b'], axis=-1)
    y = y * se[:, None, :]
    avg2 = y.mean(axis=2)                                               # (B, 16)
    hw = jax.nn.softmax(avg2 @ tp['hw_w'].T + tp['hw_b'], axis=-1)
    y = y * hw[:, :, None]
    pooled = y.max(axis=2)                                              # (B, 16)

    def lstm_dir(w, b_ih, b_hh):
        g = pooled @ w.T + b_ih + b_hh                                  # (B, 4H)
        i = jax.nn.sigmoid(g[:, 0:H])
        gg = jnp.tanh(g[:, 2 * H:3 * H])
        o = jax.nn.sigmoid(g[:, 3 * H:4 * H])
        return o * jnp.tanh(i * gg)                                     # c0=0 => f unused

    h = jnp.tanh(jnp.concatenate(
        [lstm_dir(tp['wih_f'], tp['bih_f'], tp['bhh_f']),
         lstm_dir(tp['wih_b'], tp['bih_b'], tp['bhh_b'])], axis=-1))
    return jnp.tanh(h @ tp['cls_w'].T + tp['cls_b'])


if __name__ == "__main__":
    B, WINDOW, DIM, LSTM_UNITS = 2, 128, 4, 32   # small shapes (module defaults: 660/4/660)
    key = jax.random.PRNGKey(0)
    kx, kparam = jax.random.split(key)
    x = jax.random.normal(kx, (B, WINDOW, DIM), jnp.float32)
    tp = init_torch_params(kparam, WINDOW, LSTM_UNITS)
    kp = pack_params(tp)

    out = jax.block_until_ready(cnn_lstm_cbam(x, kp))
    ref = jax.block_until_ready(reference(x, tp))

    assert out.shape == (B, 1), out.shape
    np.testing.assert_allclose(np.asarray(out), np.asarray(ref), atol=2e-3, rtol=2e-3)
    print("KERNEL_OK")
</pallas_src>

<mosaic_0001>
module attributes {stable_mosaic.version = 11 : i64} {
  func.func @cnn_lstm_cbam_kernel(%arg0: i32, %arg1: memref<8x4x128xf32, #tpu.memory_space<vmem>>, %arg2: memref<4x16x1xf32, #tpu.memory_space<vmem>>, %arg3: memref<16x1xf32, #tpu.memory_space<vmem>>, %arg4: memref<128x128xf32, #tpu.memory_space<vmem>>, %arg5: memref<1x128xf32, #tpu.memory_space<vmem>>, %arg6: memref<16x16xf32, #tpu.memory_space<vmem>>, %arg7: memref<1x16xf32, #tpu.memory_space<vmem>>, %arg8: memref<16x64xf32, #tpu.memory_space<vmem>>, %arg9: memref<1x64xf32, #tpu.memory_space<vmem>>, %arg10: memref<16x64xf32, #tpu.memory_space<vmem>>, %arg11: memref<1x64xf32, #tpu.memory_space<vmem>>, %arg12: memref<16x64xf32, #tpu.memory_space<vmem>>, %arg13: memref<1x64xf32, #tpu.memory_space<vmem>>, %arg14: memref<64x1xf32, #tpu.memory_space<vmem>>, %arg15: memref<1x1xf32, #tpu.memory_space<vmem>>, %arg16: memref<8x1xf32, #tpu.memory_space<vmem>>) attributes {dimension_semantics = [#tpu.dimension_semantics<parallel>], iteration_bounds = array<i64: 1>, scalar_prefetch = 0 : i64, scratch_operands = 0 : i64, tpu.core_type = #tpu.core_type<tc>, window_params = [{transform_indices = @transform_0, window_bounds = array<i64: 8, 4, 128>}, {pipeline_mode = #tpu.pipeline_mode<synchronous>, transform_indices = @transform_1, window_bounds = array<i64: 4, 16, 1>}, {pipeline_mode = #tpu.pipeline_mode<synchronous>, transform_indices = @transform_2, window_bounds = array<i64: 16, 1>}, {pipeline_mode = #tpu.pipeline_mode<synchronous>, transform_indices = @transform_3, window_bounds = array<i64: 128, 128>}, {pipeline_mode = #tpu.pipeline_mode<synchronous>, transform_indices = @transform_4, window_bounds = array<i64: 1, 128>}, {pipeline_mode = #tpu.pipeline_mode<synchronous>, transform_indices = @transform_5, window_bounds = array<i64: 16, 16>}, {pipeline_mode = #tpu.pipeline_mode<synchronous>, transform_indices = @transform_6, window_bounds = array<i64: 1, 16>}, {pipeline_mode = #tpu.pipeline_mode<synchronous>, transform_indices = @transform_7, window_bounds = array<i64: 16, 64>}, {pipeline_mode = #tpu.pipeline_mode<synchronous>, transform_indices = @transform_8, window_bounds = array<i64: 1, 64>}, {pipeline_mode = #tpu.pipeline_mode<synchronous>, transform_indices = @transform_9, window_bounds = array<i64: 16, 64>}, {pipeline_mode = #tpu.pipeline_mode<synchronous>, transform_indices = @transform_10, window_bounds = array<i64: 1, 64>}, {pipeline_mode = #tpu.pipeline_mode<synchronous>, transform_indices = @transform_11, window_bounds = array<i64: 16, 64>}, {pipeline_mode = #tpu.pipeline_mode<synchronous>, transform_indices = @transform_12, window_bounds = array<i64: 1, 64>}, {pipeline_mode = #tpu.pipeline_mode<synchronous>, transform_indices = @transform_13, window_bounds = array<i64: 64, 1>}, {pipeline_mode = #tpu.pipeline_mode<synchronous>, transform_indices = @transform_14, window_bounds = array<i64: 1, 1>}, {transform_indices = @transform_15, window_bounds = array<i64: 8, 1>}]} {
    %c0 = arith.constant 0 : index
    %c0_0 = arith.constant 0 : index
    %c0_1 = arith.constant 0 : index
    %0 = vector.load %arg1[%c0, %c0_0, %c0_1] : memref<8x4x128xf32, #tpu.memory_space<vmem>>, vector<8x4x128xf32>
    %c0_2 = arith.constant 0 : index
    %c0_3 = arith.constant 0 : index
    %c0_4 = arith.constant 0 : index
    %1 = vector.load %arg2[%c0_2, %c0_3, %c0_4] : memref<4x16x1xf32, #tpu.memory_space<vmem>>, vector<4x16x1xf32>
    %2 = vector.extract_strided_slice %0 {offsets = [0, 0, 0], sizes = [8, 1, 128], strides = [1, 1, 1]} : vector<8x4x128xf32> to vector<8x1x128xf32>
    %3 = vector.extract_strided_slice %1 {offsets = [0, 0, 0], sizes = [1, 16, 1], strides = [1, 1, 1]} : vector<4x16x1xf32> to vector<1x16x1xf32>
    %4 = vector.broadcast %2 : vector<8x1x128xf32> to vector<8x16x128xf32>
    %5 = vector.broadcast %3 : vector<1x16x1xf32> to vector<8x16x128xf32>
    %6 = arith.mulf %4, %5 : vector<8x16x128xf32>
    %7 = vector.extract_strided_slice %0 {offsets = [0, 1, 0], sizes = [8, 1, 128], strides = [1, 1, 1]} : vector<8x4x128xf32> to vector<8x1x128xf32>
    %8 = vector.extract_strided_slice %1 {offsets = [1, 0, 0], sizes = [1, 16, 1], strides = [1, 1, 1]} : vector<4x16x1xf32> to vector<1x16x1xf32>
    %9 = vector.broadcast %7 : vector<8x1x128xf32> to vector<8x16x128xf32>
    %10 = vector.broadcast %8 : vector<1x16x1xf32> to vector<8x16x128xf32>
    %11 = arith.mulf %9, %10 : vector<8x16x128xf32>
    %12 = arith.addf %6, %11 : vector<8x16x128xf32>
    %13 = vector.extract_strided_slice %0 {offsets = [0, 2, 0], sizes = [8, 1, 128], strides = [1, 1, 1]} : vector<8x4x128xf32> to vector<8x1x128xf32>
    %14 = vector.extract_strided_slice %1 {offsets = [2, 0, 0], sizes = [1, 16, 1], strides = [1, 1, 1]} : vector<4x16x1xf32> to vector<1x16x1xf32>
    %15 = vector.broadcast %13 : vector<8x1x128xf32> to vector<8x16x128xf32>
    %16 = vector.broadcast %14 : vector<1x16x1xf32> to vector<8x16x128xf32>
    %17 = arith.mulf %15, %16 : vector<8x16x128xf32>
    %18 = arith.addf %12, %17 : vector<8x16x128xf32>
    %19 = vector.extract_strided_slice %0 {offsets = [0, 3, 0], sizes = [8, 1, 128], strides = [1, 1, 1]} : vector<8x4x128xf32> to vector<8x1x128xf32>
    %20 = vector.extract_strided_slice %1 {offsets = [3, 0, 0], sizes = [1, 16, 1], strides = [1, 1, 1]} : vector<4x16x1xf32> to vector<1x16x1xf32>
    %21 = vector.broadcast %19 : vector<8x1x128xf32> to vector<8x16x128xf32>
    %22 = vector.broadcast %20 : vector<1x16x1xf32> to vector<8x16x128xf32>
    %23 = arith.mulf %21, %22 : vector<8x16x128xf32>
    %24 = arith.addf %18, %23 : vector<8x16x128xf32>
    %c0_5 = arith.constant 0 : index
    %c0_6 = arith.constant 0 : index
    %25 = vector.load %arg3[%c0_5, %c0_6] : memref<16x1xf32, #tpu.memory_space<vmem>>, vector<16x1xf32>
    %26 = vector.shape_cast %25 : vector<16x1xf32> to vector<1x16x1xf32>
    %27 = vector.broadcast %26 : vector<1x16x1xf32> to vector<8x16x128xf32>
    %28 = arith.addf %24, %27 : vector<8x16x128xf32>
    %29 = arith.negf %28 : vector<8x16x128xf32>
    %30 = math.exp %29 : vector<8x16x128xf32>
    %cst = arith.constant 1.000000e+00 : f32
    %31 = vector.broadcast %cst : f32 to vector<8x16x128xf32>
    %32 = arith.addf %31, %30 : vector<8x16x128xf32>
    %33 = arith.divf %31, %32 : vector<8x16x128xf32>
    %cst_7 = arith.constant dense<0.000000e+00> : vector<8x128xf32>
    %34 = vector.multi_reduction <add>, %33, %cst_7 [1] : vector<8x16x128xf32> to vector<8x128xf32>
    %cst_8 = arith.constant 1.600000e+01 : f32
    %35 = vector.broadcast %cst_8 : f32 to vector<8x128xf32>
    %36 = arith.divf %34, %35 : vector<8x128xf32>
    %c0_9 = arith.constant 0 : index
    %c0_10 = arith.constant 0 : index
    %37 = vector.load %arg4[%c0_9, %c0_10] : memref<128x128xf32, #tpu.memory_space<vmem>>, vector<128x128xf32>
    %cst_11 = arith.constant dense<0.000000e+00> : vector<8x128xf32>
    %38 = tpu.matmul %36, %37, %cst_11 {dimension_numbers = #tpu.dot_dimension_numbers<[1], [0], [0], [1], [0, 0, 1, 1], [], []>} : vector<8x128xf32>, vector<128x128xf32>, vector<8x128xf32> -> vector<8x128xf32>
    %c0_12 = arith.constant 0 : index
    %c0_13 = arith.constant 0 : index
    %39 = vector.load %arg5[%c0_12, %c0_13] : memref<1x128xf32, #tpu.memory_space<vmem>>, vector<1x128xf32>
    %40 = vector.broadcast %39 : vector<1x128xf32> to vector<8x128xf32>
    %41 = arith.addf %38, %40 : vector<8x128xf32>
    %cst_14 = arith.constant dense<0xFF800000> : vector<8xf32>
    %42 = vector.multi_reduction <maximumf>, %41, %cst_14 [1] : vector<8x128xf32> to vector<8xf32>
    %43 = vector.shape_cast %42 : vector<8xf32> to vector<8x1xf32>
    %44 = vector.broadcast %43 : vector<8x1xf32> to vector<8x128xf32>
    %45 = arith.subf %41, %44 : vector<8x128xf32>
    %46 = math.exp %45 : vector<8x128xf32>
    %cst_15 = arith.constant dense<0.000000e+00> : vector<8xf32>
    %47 = vector.multi_reduction <add>, %46, %cst_15 [1] : vector<8x128xf32> to vector<8xf32>
    %48 = vector.shape_cast %47 : vector<8xf32> to vector<8x1xf32>
    %49 = tpu.reciprocal %48 {approx = true} : vector<8x1xf32> -> vector<8x1xf32>
    %50 = vector.broadcast %49 : vector<8x1xf32> to vector<8x128xf32>
    %51 = arith.mulf %46, %50 : vector<8x128xf32>
    %52 = vector.shape_cast %51 : vector<8x128xf32> to vector<8x1x128xf32>
    %53 = vector.broadcast %52 : vector<8x1x128xf32> to vector<8x16x128xf32>
    %54 = arith.mulf %33, %53 : vector<8x16x128xf32>
    %cst_16 = arith.constant dense<0.000000e+00> : vector<8x16xf32>
    %55 = vector.multi_reduction <add>, %54, %cst_16 [2] : vector<8x16x128xf32> to vector<8x16xf32>
    %cst_17 = arith.constant 1.280000e+02 : f32
    %56 = vector.broadcast %cst_17 : f32 to vector<8x16xf32>
    %57 = arith.divf %55, %56 : vector<8x16xf32>
    %c0_18 = arith.constant 0 : index
    %c0_19 = arith.constant 0 : index
    %58 = vector.load %arg6[%c0_18, %c0_19] : memref<16x16xf32, #tpu.memory_space<vmem>>, vector<16x16xf32>
    %cst_20 = arith.constant dense<0.000000e+00> : vector<8x16xf32>
    %59 = tpu.matmul %57, %58, %cst_20 {dimension_numbers = #tpu.dot_dimension_numbers<[1], [0], [0], [1], [0, 0, 1, 1], [], []>} : vector<8x16xf32>, vector<16x16xf32>, vector<8x16xf32> -> vector<8x16xf32>
    %c0_21 = arith.constant 0 : index
    %c0_22 = arith.constant 0 : index
    %60 = vector.load %arg7[%c0_21, %c0_22] : memref<1x16xf32, #tpu.memory_space<vmem>>, vector<1x16xf32>
    %61 = vector.broadcast %60 : vector<1x16xf32> to vector<8x16xf32>
    %62 = arith.addf %59, %61 : vector<8x16xf32>
    %cst_23 = arith.constant dense<0xFF800000> : vector<8xf32>
    %63 = vector.multi_reduction <maximumf>, %62, %cst_23 [1] : vector<8x16xf32> to vector<8xf32>
    %64 = vector.shape_cast %63 : vector<8xf32> to vector<8x1xf32>
    %65 = vector.broadcast %64 : vector<8x1xf32> to vector<8x16xf32>
    %66 = arith.subf %62, %65 : vector<8x16xf32>
    %67 = math.exp %66 : vector<8x16xf32>
    %cst_24 = arith.constant dense<0.000000e+00> : vector<8xf32>
    %68 = vector.multi_reduction <add>, %67, %cst_24 [1] : vector<8x16xf32> to vector<8xf32>
    %69 = vector.shape_cast %68 : vector<8xf32> to vector<8x1xf32>
    %70 = tpu.reciprocal %69 {approx = true} : vector<8x1xf32> -> vector<8x1xf32>
    %71 = vector.broadcast %70 : vector<8x1xf32> to vector<8x16xf32>
    %72 = arith.mulf %67, %71 : vector<8x16xf32>
    %cst_25 = arith.constant dense<0xFF800000> : vector<8x16xf32>
    %73 = vector.multi_reduction <maximumf>, %54, %cst_25 [2] : vector<8x16x128xf32> to vector<8x16xf32>
    %74 = arith.mulf %73, %72 : vector<8x16xf32>
    %c0_26 = arith.constant 0 : index
    %c0_27 = arith.constant 0 : index
    %75 = vector.load %arg8[%c0_26, %c0_27] : memref<16x64xf32, #tpu.memory_space<vmem>>, vector<16x64xf32>
    %cst_28 = arith.constant dense<0.000000e+00> : vector<8x64xf32>
    %76 = tpu.matmul %74, %75, %cst_28 {dimension_numbers = #tpu.dot_dimension_numbers<[1], [0], [0], [1], [0, 0, 1, 1], [], []>} : vector<8x16xf32>, vector<16x64xf32>, vector<8x64xf32> -> vector<8x64xf32>
    %c0_29 = arith.constant 0 : index
    %c0_30 = arith.constant 0 : index
    %77 = vector.load %arg9[%c0_29, %c0_30] : memref<1x64xf32, #tpu.memory_space<vmem>>, vector<1x64xf32>
    %78 = vector.broadcast %77 : vector<1x64xf32> to vector<8x64xf32>
    %79 = arith.addf %76, %78 : vector<8x64xf32>
    %80 = arith.negf %79 : vector<8x64xf32>
    %81 = math.exp %80 : vector<8x64xf32>
    %cst_31 = arith.constant 1.000000e+00 : f32
    %82 = vector.broadcast %cst_31 : f32 to vector<8x64xf32>
    %83 = arith.addf %82, %81 : vector<8x64xf32>
    %84 = arith.divf %82, %83 : vector<8x64xf32>
    %c0_32 = arith.constant 0 : index
    %c0_33 = arith.constant 0 : index
    %85 = vector.load %arg10[%c0_32, %c0_33] : memref<16x64xf32, #tpu.memory_space<vmem>>, vector<16x64xf32>
    %cst_34 = arith.constant dense<0.000000e+00> : vector<8x64xf32>
    %86 = tpu.matmul %74, %85, %cst_34 {dimension_numbers = #tpu.dot_dimension_numbers<[1], [0], [0], [1], [0, 0, 1, 1], [], []>} : vector<8x16xf32>, vector<16x64xf32>, vector<8x64xf32> -> vector<8x64xf32>
    %c0_35 = arith.constant 0 : index
    %c0_36 = arith.constant 0 : index
    %87 = vector.load %arg11[%c0_35, %c0_36] : memref<1x64xf32, #tpu.memory_space<vmem>>, vector<1x64xf32>
    %88 = vector.broadcast %87 : vector<1x64xf32> to vector<8x64xf32>
    %89 = arith.addf %86, %88 : vector<8x64xf32>
    %90 = math.tanh %89 : vector<8x64xf32>
    %c0_37 = arith.constant 0 : index
    %c0_38 = arith.constant 0 : index
    %91 = vector.load %arg12[%c0_37, %c0_38] : memref<16x64xf32, #tpu.memory_space<vmem>>, vector<16x64xf32>
    %cst_39 = arith.constant dense<0.000000e+00> : vector<8x64xf32>
    %92 = tpu.matmul %74, %91, %cst_39 {dimension_numbers = #tpu.dot_dimension_numbers<[1], [0], [0], [1], [0, 0, 1, 1], [], []>} : vector<8x16xf32>, vector<16x64xf32>, vector<8x64xf32> -> vector<8x64xf32>
    %c0_40 = arith.constant 0 : index
    %c0_41 = arith.constant 0 : index
    %93 = vector.load %arg13[%c0_40, %c0_41] : memref<1x64xf32, #tpu.memory_space<vmem>>, vector<1x64xf32>
    %94 = vector.broadcast %93 : vector<1x64xf32> to vector<8x64xf32>
    %95 = arith.addf %92, %94 : vector<8x64xf32>
    %96 = arith.negf %95 : vector<8x64xf32>
    %97 = math.exp %96 : vector<8x64xf32>
    %cst_42 = arith.constant 1.000000e+00 : f32
    %98 = vector.broadcast %cst_42 : f32 to vector<8x64xf32>
    %99 = arith.addf %98, %97 : vector<8x64xf32>
    %100 = arith.divf %98, %99 : vector<8x64xf32>
    %101 = arith.mulf %84, %90 : vector<8x64xf32>
    %102 = math.tanh %101 : vector<8x64xf32>
    %103 = arith.mulf %100, %102 : vector<8x64xf32>
    %104 = math.tanh %103 : vector<8x64xf32>
    %c0_43 = arith.constant 0 : index
    %c0_44 = arith.constant 0 : index
    %105 = vector.load %arg14[%c0_43, %c0_44] : memref<64x1xf32, #tpu.memory_space<vmem>>, vector<64x1xf32>
    %cst_45 = arith.constant dense<0.000000e+00> : vector<8x1xf32>
    %106 = tpu.matmul %104, %105, %cst_45 {dimension_numbers = #tpu.dot_dimension_numbers<[1], [0], [0], [1], [0, 0, 1, 1], [], []>} : vector<8x64xf32>, vector<64x1xf32>, vector<8x1xf32> -> vector<8x1xf32>
    %c0_46 = arith.constant 0 : index
    %c0_47 = arith.constant 0 : index
    %107 = vector.load %arg15[%c0_46, %c0_47] : memref<1x1xf32, #tpu.memory_space<vmem>>, vector<1x1xf32>
    %108 = vector.broadcast %107 : vector<1x1xf32> to vector<8x1xf32>
    %109 = arith.addf %106, %108 : vector<8x1xf32>
    %110 = math.tanh %109 : vector<8x1xf32>
    %c0_48 = arith.constant 0 : index
    %c0_49 = arith.constant 0 : index
    %111 = vector.load %arg16[%c0_48, %c0_49] : memref<8x1xf32, #tpu.memory_space<vmem>>, vector<8x1xf32>
    tpu.vector_store %arg16[%c0_48, %c0_49], %110 {strides = array<i32>} : memref<8x1xf32, #tpu.memory_space<vmem>>, vector<8x1xf32>,
    return
  }
  func.func @transform_0(%arg0: i32) -> (i32, i32, i32) {
    %c0_i32 = arith.constant 0 : i32
    %c0_i32_0 = arith.constant 0 : i32
    %c0_i32_1 = arith.constant 0 : i32
    return %arg0, %c0_i32, %c0_i32_0 : i32, i32, i32
  }
  func.func @transform_1(%arg0: i32) -> (i32, i32, i32) {
    %c0_i32 = arith.constant 0 : i32
    %c0_i32_0 = arith.constant 0 : i32
    %c0_i32_1 = arith.constant 0 : i32
    %c0_i32_2 = arith.constant 0 : i32
    return %c0_i32, %c0_i32_0, %c0_i32_1 : i32, i32, i32
  }
  func.func @transform_2(%arg0: i32) -> (i32, i32) {
    %c0_i32 = arith.constant 0 : i32
    %c0_i32_0 = arith.constant 0 : i32
    %c0_i32_1 = arith.constant 0 : i32
    return %c0_i32, %c0_i32_0 : i32, i32
  }
  func.func @transform_3(%arg0: i32) -> (i32, i32) {
    %c0_i32 = arith.constant 0 : i32
    %c0_i32_0 = arith.constant 0 : i32
    %c0_i32_1 = arith.constant 0 : i32
    return %c0_i32, %c0_i32_0 : i32, i32
  }
  func.func @transform_4(%arg0: i32) -> (i32, i32) {
    %c0_i32 = arith.constant 0 : i32
    %c0_i32_0 = arith.constant 0 : i32
    %c0_i32_1 = arith.constant 0 : i32
    return %c0_i32, %c0_i32_0 : i32, i32
  }
  func.func @transform_5(%arg0: i32) -> (i32, i32) {
    %c0_i32 = arith.constant 0 : i32
    %c0_i32_0 = arith.constant 0 : i32
    %c0_i32_1 = arith.constant 0 : i32
    return %c0_i32, %c0_i32_0 : i32, i32
  }
  func.func @transform_6(%arg0: i32) -> (i32, i32) {
    %c0_i32 = arith.constant 0 : i32
    %c0_i32_0 = arith.constant 0 : i32
    %c0_i32_1 = arith.constant 0 : i32
    return %c0_i32, %c0_i32_0 : i32, i32
  }
  func.func @transform_7(%arg0: i32) -> (i32, i32) {
    %c0_i32 = arith.constant 0 : i32
    %c0_i32_0 = arith.constant 0 : i32
    %c0_i32_1 = arith.constant 0 : i32
    return %c0_i32, %c0_i32_0 : i32, i32
  }
  func.func @transform_8(%arg0: i32) -> (i32, i32) {
    %c0_i32 = arith.constant 0 : i32
    %c0_i32_0 = arith.constant 0 : i32
    %c0_i32_1 = arith.constant 0 : i32
    return %c0_i32, %c0_i32_0 : i32, i32
  }
  func.func @transform_9(%arg0: i32) -> (i32, i32) {
    %c0_i32 = arith.constant 0 : i32
    %c0_i32_0 = arith.constant 0 : i32
    %c0_i32_1 = arith.constant 0 : i32
    return %c0_i32, %c0_i32_0 : i32, i32
  }
  func.func @transform_10(%arg0: i32) -> (i32, i32) {
    %c0_i32 = arith.constant 0 : i32
    %c0_i32_0 = arith.constant 0 : i32
    %c0_i32_1 = arith.constant 0 : i32
    return %c0_i32, %c0_i32_0 : i32, i32
  }
  func.func @transform_11(%arg0: i32) -> (i32, i32) {
    %c0_i32 = arith.constant 0 : i32
    %c0_i32_0 = arith.constant 0 : i32
    %c0_i32_1 = arith.constant 0 : i32
    return %c0_i32, %c0_i32_0 : i32, i32
  }
  func.func @transform_12(%arg0: i32) -> (i32, i32) {
    %c0_i32 = arith.constant 0 : i32
    %c0_i32_0 = arith.constant 0 : i32
    %c0_i32_1 = arith.constant 0 : i32
    return %c0_i32, %c0_i32_0 : i32, i32
  }
  func.func @transform_13(%arg0: i32) -> (i32, i32) {
    %c0_i32 = arith.constant 0 : i32
    %c0_i32_0 = arith.constant 0 : i32
    %c0_i32_1 = arith.constant 0 : i32
    return %c0_i32, %c0_i32_0 : i32, i32
  }
  func.func @transform_14(%arg0: i32) -> (i32, i32) {
    %c0_i32 = arith.constant 0 : i32
    %c0_i32_0 = arith.constant 0 : i32
    %c0_i32_1 = arith.constant 0 : i32
    return %c0_i32, %c0_i32_0 : i32, i32
  }
  func.func @transform_15(%arg0: i32) -> (i32, i32) {
    %c0_i32 = arith.constant 0 : i32
    %c0_i32_0 = arith.constant 0 : i32
    return %arg0, %c0_i32 : i32, i32
  }
}

</mosaic_0001>

<llo_original>
// kernel: tpu_custom_call.1
$region0: #{tpu_custom_call.1}
  #allocation0 [shape = 'u32[]', space=smem, size = 0x4, offset = 0x4, fixed_abs, tag = 'smem constant byte address 0x4 - core index']
  #allocation1 [shape = 'u32[72,128]{1,0:T(1,128)}', space=vmem, size = 0x9000, scoped, tag = 'internal scratch']
  #allocation2 [shape = 'f32[1,1]{1,0:T(1,128)S(1)}', space=vmem, size = 0x200, scoped, tag = 'scoped memory for tpu_custom_call.1']
  %s0 = inlined_call_operand.hbm [shape: f32[8,4,128], index: 0, kind: input, shape index: {}]
  %s1 = inlined_call_operand.vmem [shape: f32[4,16,1], index: 1, kind: input, shape index: {}]
  %s2 = inlined_call_operand.vmem [shape: f32[16,1], index: 2, kind: input, shape index: {}]
  %s3 = inlined_call_operand.vmem [shape: f32[128,128], index: 3, kind: input, shape index: {}]
  %s4 = inlined_call_operand.hbm [shape: f32[1,128], index: 4, kind: input, shape index: {}]
  %s5 = inlined_call_operand.vmem [shape: f32[16,16], index: 5, kind: input, shape index: {}]
  %s6 = inlined_call_operand.hbm [shape: f32[1,16], index: 6, kind: input, shape index: {}]
  %s7 = inlined_call_operand.hbm [shape: f32[16,64], index: 7, kind: input, shape index: {}]
  %s8 = inlined_call_operand.hbm [shape: f32[1,64], index: 8, kind: input, shape index: {}]
  %s9 = inlined_call_operand.hbm [shape: f32[16,64], index: 9, kind: input, shape index: {}]
  %s10 = inlined_call_operand.hbm [shape: f32[1,64], index: 10, kind: input, shape index: {}]
  %s11 = inlined_call_operand.vmem [shape: f32[16,64], index: 11, kind: input, shape index: {}]
  %s12 = inlined_call_operand.vmem [shape: f32[1,64], index: 12, kind: input, shape index: {}]
  %s13 = inlined_call_operand.vmem [shape: f32[64,1], index: 13, kind: input, shape index: {}]
  %s14 = inlined_call_operand.<no memory space> [shape: f32[1,1], index: 14, kind: input, shape index: {}]
  %s15 = inlined_call_operand.vmem [shape: f32[8,1], index: 15, kind: output, shape index: {}]
  %s16 = sld [smem:[#allocation0]]
  $region98: #{tpu_custom_call.1} parent=0
    _
  %s18 = ssub.s32 1, %s16
  %s19 = scalar_select 0, %s18, %s16
  %v20 = vstv %s14
  %21 = vst [vmem:[#allocation2] sm:$0x1] %v20
  $region1: #{tpu_custom_call.1} parent=0
    #allocation3 [shape = 'u8[16384]{0}', space=vmem, size = 0x4000, scoped, tag = 'input window, operand 0, single buffered']
    #allocation4 [shape = 's32[1]{0}', space=sflag, size = 0x4, scoped, tag = 'scoped memory for tpu_custom_call.1']
    #allocation5 [shape = 'u8[512]{0}', space=vmem, size = 0x400, scoped, tag = 'input window, operand 4, single buffered']
    #allocation6 [shape = 's32[1]{0}', space=sflag, size = 0x4, scoped, tag = 'scoped memory for tpu_custom_call.1']
    #allocation7 [shape = 'u8[512]{0}', space=vmem, size = 0x400, scoped, tag = 'input window, operand 6, single buffered']
    #allocation8 [shape = 'u8[8192]{0}', space=vmem, size = 0x2000, scoped, tag = 'input window, operand 7, single buffered']
    #allocation9 [shape = 's32[1]{0}', space=sflag, size = 0x4, scoped, tag = 'scoped memory for tpu_custom_call.1']
    #allocation10 [shape = 'u8[512]{0}', space=vmem, size = 0x400, scoped, tag = 'input window, operand 8, single buffered']
    #allocation11 [shape = 'u8[8192]{0}', space=vmem, size = 0x2000, scoped, tag = 'input window, operand 9, single buffered']
    #allocation12 [shape = 's32[1]{0}', space=sflag, size = 0x4, scoped, tag = 'scoped memory for tpu_custom_call.1']
    #allocation13 [shape = 'u8[512]{0}', space=vmem, size = 0x400, scoped, tag = 'input window, operand 10, single buffered']
    %22 = vsyncpa [#allocation4], 0
    %23 = vsyncpa [#allocation6], 0
    %24 = vsyncpa [#allocation9], 0
    %25 = vsyncpa [#allocation12], 0
    // Predicated region
    $region2: #{tpu_custom_call.1} parent=1 // pred_check
      _
    $region3: #{tpu_custom_call.1} parent=1 // pred_check_branch
      %27 = sbr.rel (0) target = $region5
    $region4: #{tpu_custom_call.1} parent=1 // pred_region
      %29 = vsyncadd [#allocation4], 0
      %s30 = sshll.u32 %s0, 4
      %s31 = int_to_ptr.hbm [resolvable:$true] %s30
      %s32 = sshll.u32 [#allocation3], 4
      %s33 = int_to_ptr.vmem [resolvable:$true] %s32
      %38 = dma.hbm_to_vmem [thread:$0]  %s31, 512, %s33, [#allocation4], 64, 64, 4
    $region5: #{tpu_custom_call.1} parent=1 // pred_fallthru
      _
    // Predicated region
    $region6: #{tpu_custom_call.1} parent=1 // pred_check
      _
    $region7: #{tpu_custom_call.1} parent=1 // pred_check_branch
      %40 = sbr.rel (0) target = $region9
    $region8: #{tpu_custom_call.1} parent=1 // pred_region
      _
    $region9: #{tpu_custom_call.1} parent=1 // pred_fallthru
      _
    // Predicated region
    $region10: #{tpu_custom_call.1} parent=1 // pred_check
      _
    $region11: #{tpu_custom_call.1} parent=1 // pred_check_branch
      %42 = sbr.rel (0) target = $region13
    $region12: #{tpu_custom_call.1} parent=1 // pred_region
      _
    $region13: #{tpu_custom_call.1} parent=1 // pred_fallthru
      _
    // Predicated region
    $region14: #{tpu_custom_call.1} parent=1 // pred_check
      _
    $region15: #{tpu_custom_call.1} parent=1 // pred_check_branch
      %44 = sbr.rel (0) target = $region17
    $region16: #{tpu_custom_call.1} parent=1 // pred_region
      _
    $region17: #{tpu_custom_call.1} parent=1 // pred_fallthru
      _
    // Predicated region
    $region18: #{tpu_custom_call.1} parent=1 // pred_check
      _
    $region19: #{tpu_custom_call.1} parent=1 // pred_check_branch
      %46 = sbr.rel (0) target = $region21
    $region20: #{tpu_custom_call.1} parent=1 // pred_region
      %48 = vsyncadd [#allocation6], 0
      %s50 = sshll.u32 %s4, 4
      %s51 = int_to_ptr.hbm [resolvable:$true] %s50
      %s52 = sshll.u32 [#allocation5], 4
      %s53 = int_to_ptr.vmem [resolvable:$true] %s52
      %55 = dma.hbm_to_vmem [thread:$0]  %s51, 16, %s53, [#allocation6]
    $region21: #{tpu_custom_call.1} parent=1 // pred_fallthru
      _
    // Predicated region
    $region22: #{tpu_custom_call.1} parent=1 // pred_check
      _
    $region23: #{tpu_custom_call.1} parent=1 // pred_check_branch
      %57 = sbr.rel (0) target = $region25
    $region24: #{tpu_custom_call.1} parent=1 // pred_region
      _
    $region25: #{tpu_custom_call.1} parent=1 // pred_fallthru
      _
    // Predicated region
    $region26: #{tpu_custom_call.1} parent=1 // pred_check
      _
    $region27: #{tpu_custom_call.1} parent=1 // pred_check_branch
      %59 = sbr.rel (0) target = $region29
    $region28: #{tpu_custom_call.1} parent=1 // pred_region
      %61 = vsyncadd [#allocation6], 0
      %s63 = sshll.u32 %s6, 4
      %s64 = int_to_ptr.hbm [resolvable:$true] %s63
      %s65 = sshll.u32 [#allocation7], 4
      %s66 = int_to_ptr.vmem [resolvable:$true] %s65
      %68 = dma.hbm_to_vmem [thread:$0]  %s64, 16, %s66, [#allocation6]
    $region29: #{tpu_custom_call.1} parent=1 // pred_fallthru
      _
    // Predicated region
    $region30: #{tpu_custom_call.1} parent=1 // pred_check
      _
    $region31: #{tpu_custom_call.1} parent=1 // pred_check_branch
      %70 = sbr.rel (0) target = $region33
    $region32: #{tpu_custom_call.1} parent=1 // pred_region
      %72 = vsyncadd [#allocation9], 0
      %s73 = sshll.u32 %s7, 4
      %s74 = int_to_ptr.hbm [resolvable:$true] %s73
      %s75 = sshll.u32 [#allocation8], 4
      %s76 = int_to_ptr.vmem [resolvable:$true] %s75
      %81 = dma.hbm_to_vmem [thread:$0]  %s74, 256, %s76, [#allocation9], 128, 128, 8
    $region33: #{tpu_custom_call.1} parent=1 // pred_fallthru
      _
    // Predicated region
    $region34: #{tpu_custom_call.1} parent=1 // pred_check
      _
    $region35: #{tpu_custom_call.1} parent=1 // pred_check_branch
      %83 = sbr.rel (0) target = $region37
    $region36: #{tpu_custom_call.1} parent=1 // pred_region
      %85 = vsyncadd [#allocation9], 0
      %s87 = sshll.u32 %s8, 4
      %s88 = int_to_ptr.hbm [resolvable:$true] %s87
      %s89 = sshll.u32 [#allocation10], 4
      %s90 = int_to_ptr.vmem [resolvable:$true] %s89
      %92 = dma.hbm_to_vmem [thread:$0]  %s88, 16, %s90, [#allocation9]
    $region37: #{tpu_custom_call.1} parent=1 // pred_fallthru
      _
    // Predicated region
    $region38: #{tpu_custom_call.1} parent=1 // pred_check
      _
    $region39: #{tpu_custom_call.1} parent=1 // pred_check_branch
      %94 = sbr.rel (0) target = $region41
    $region40: #{tpu_custom_call.1} parent=1 // pred_region
      %96 = vsyncadd [#allocation12], 0
      %s97 = sshll.u32 %s9, 4
      %s98 = int_to_ptr.hbm [resolvable:$true] %s97
      %s99 = sshll.u32 [#allocation11], 4
      %s100 = int_to_ptr.vmem [resolvable:$true] %s99
      %105 = dma.hbm_to_vmem [thread:$0]  %s98, 256, %s100, [#allocation12], 128, 128, 8
    $region41: #{tpu_custom_call.1} parent=1 // pred_fallthru
      _
    // Predicated region
    $region42: #{tpu_custom_call.1} parent=1 // pred_check
      _
    $region43: #{tpu_custom_call.1} parent=1 // pred_check_branch
      %107 = sbr.rel (0) target = $region45
    $region44: #{tpu_custom_call.1} parent=1 // pred_region
      %109 = vsyncadd [#allocation12], 0
      %s111 = sshll.u32 %s10, 4
      %s112 = int_to_ptr.hbm [resolvable:$true] %s111
      %s113 = sshll.u32 [#allocation13], 4
      %s114 = int_to_ptr.vmem [resolvable:$true] %s113
      %116 = dma.hbm_to_vmem [thread:$0]  %s112, 16, %s114, [#allocation12]
    $region45: #{tpu_custom_call.1} parent=1 // pred_fallthru
      _
    // Predicated region
    $region46: #{tpu_custom_call.1} parent=1 // pred_check
      _
    $region47: #{tpu_custom_call.1} parent=1 // pred_check_branch
      %118 = sbr.rel (0) target = $region49
    $region48: #{tpu_custom_call.1} parent=1 // pred_region
      _
    $region49: #{tpu_custom_call.1} parent=1 // pred_fallthru
      _
    // Predicated region
    $region50: #{tpu_custom_call.1} parent=1 // pred_check
      _
    $region51: #{tpu_custom_call.1} parent=1 // pred_check_branch
      %120 = sbr.rel (0) target = $region53
    $region52: #{tpu_custom_call.1} parent=1 // pred_region
      _
    $region53: #{tpu_custom_call.1} parent=1 // pred_fallthru
      _
    // Predicated region
    $region54: #{tpu_custom_call.1} parent=1 // pred_check
      _
    $region55: #{tpu_custom_call.1} parent=1 // pred_check_branch
      %122 = sbr.rel (0) target = $region57
    $region56: #{tpu_custom_call.1} parent=1 // pred_region
      _
    $region57: #{tpu_custom_call.1} parent=1 // pred_fallthru
      _
    // Predicated region
    $region58: #{tpu_custom_call.1} parent=1 // pred_check
      _
    $region59: #{tpu_custom_call.1} parent=1 // pred_check_branch
      %124 = sbr.rel (0) target = $region61
    $region60: #{tpu_custom_call.1} parent=1 // pred_region
      _
    $region61: #{tpu_custom_call.1} parent=1 // pred_fallthru
      _
    // Predicated region
    $region62: #{tpu_custom_call.1} parent=1 // pred_check
      _
    $region63: #{tpu_custom_call.1} parent=1 // pred_check_branch
      %126 = sbr.rel (0) target = $region65
    $region64: #{tpu_custom_call.1} parent=1 // pred_region
      %128 = dma.done [#allocation4], 512
    $region65: #{tpu_custom_call.1} parent=1 // pred_fallthru
      _
    // Predicated region
    $region66: #{tpu_custom_call.1} parent=1 // pred_check
      _
    $region67: #{tpu_custom_call.1} parent=1 // pred_check_branch
      %130 = sbr.rel (0) target = $region69
    $region68: #{tpu_custom_call.1} parent=1 // pred_region
      %132 = dma.done [#allocation6], 16
    $region69: #{tpu_custom_call.1} parent=1 // pred_fallthru
      _
    // Predicated region
    $region70: #{tpu_custom_call.1} parent=1 // pred_check
      _
    $region71: #{tpu_custom_call.1} parent=1 // pred_check_branch
      %134 = sbr.rel (0) target = $region73
    $region72: #{tpu_custom_call.1} parent=1 // pred_region
      %136 = dma.done [#allocation6], 16
    $region73: #{tpu_custom_call.1} parent=1 // pred_fallthru
      _
    // Predicated region
    $region74: #{tpu_custom_call.1} parent=1 // pred_check
      _
    $region75: #{tpu_custom_call.1} parent=1 // pred_check_branch
      %138 = sbr.rel (0) target = $region77
    $region76: #{tpu_custom_call.1} parent=1 // pred_region
      %140 = dma.done [#allocation9], 256
    $region77: #{tpu_custom_call.1} parent=1 // pred_fallthru
      _
    // Predicated region
    $region78: #{tpu_custom_call.1} parent=1 // pred_check
      _
    $region79: #{tpu_custom_call.1} parent=1 // pred_check_branch
      %142 = sbr.rel (0) target = $region81
    $region80: #{tpu_custom_call.1} parent=1 // pred_region
      %144 = dma.done [#allocation9], 16
    $region81: #{tpu_custom_call.1} parent=1 // pred_fallthru
      _
    // Predicated region
    $region82: #{tpu_custom_call.1} parent=1 // pred_check
      _
    $region83: #{tpu_custom_call.1} parent=1 // pred_check_branch
      %146 = sbr.rel (0) target = $region85
    $region84: #{tpu_custom_call.1} parent=1 // pred_region
      %148 = dma.done [#allocation12], 256
    $region85: #{tpu_custom_call.1} parent=1 // pred_fallthru
      _
    // Predicated region
    $region86: #{tpu_custom_call.1} parent=1 // pred_check
      _
    $region87: #{tpu_custom_call.1} parent=1 // pred_check_branch
      %150 = sbr.rel (0) target = $region89
    $region88: #{tpu_custom_call.1} parent=1 // pred_region
      %152 = dma.done [#allocation12], 16
    $region89: #{tpu_custom_call.1} parent=1 // pred_fallthru
      _
    %v153 = vld [vmem:[#allocation3] sm:$0xf]
    %v154 = vld [vmem:[#allocation3 + $0x4] sm:$0xf]
    %v155 = vld [vmem:[#allocation3 + $0x8] sm:$0xf]
    %v156 = vld [vmem:[#allocation3 + $0xc] sm:$0xf]
    %v157 = vld [vmem:[#allocation3 + $0x10] sm:$0xf]
    %v158 = vld [vmem:[#allocation3 + $0x14] sm:$0xf]
    %v159 = vld [vmem:[#allocation3 + $0x18] sm:$0xf]
    %v160 = vld [vmem:[#allocation3 + $0x1c] sm:$0xf]
    %v161 = vld [vmem:[%s1] sm:$0xff]
    %v162 = vld [vmem:[%s1 + $0x8] sm:$0xff]
    %v163 = vld [vmem:[%s1 + $0x10] sm:$0xff]
    %v164 = vld [vmem:[%s1 + $0x18] sm:$0xff]
    %v165 = vld [vmem:[%s1 + $0x20] sm:$0xff]
    %v166 = vld [vmem:[%s1 + $0x28] sm:$0xff]
    %v167 = vld [vmem:[%s1 + $0x30] sm:$0xff]
    %v168 = vld [vmem:[%s1 + $0x38] sm:$0xff]
    %v169 = vperm.slane %v153, 0
    %v170 = vperm.slane %v154, 0
    %v171 = vperm.slane %v155, 0
    %v172 = vperm.slane %v156, 0
    %v173 = vperm.slane %v157, 0
    %v174 = vperm.slane %v158, 0
    %v175 = vperm.slane %v159, 0
    %v176 = vperm.slane %v160, 0
    %178 = vset.pattern.permute.xlu0 0
    %179 = vperm.xlu0 %178, %v161
    %v180 = vpop.permute.xlu0 %179
    %183 = vset.pattern.permute.xlu0 0
    %184 = vperm.xlu0 %183, %v162
    %v185 = vpop.permute.xlu0 %184
    %v187 = vmul.f32 %v169, %v180
    %v188 = vmul.f32 %v169, %v185
    %v189 = vmul.f32 %v170, %v180
    %v190 = vmul.f32 %v170, %v185
    %v191 = vmul.f32 %v171, %v180
    %v192 = vmul.f32 %v171, %v185
    %v193 = vmul.f32 %v172, %v180
    %v194 = vmul.f32 %v172, %v185
    %v195 = vmul.f32 %v173, %v180
    %v196 = vmul.f32 %v173, %v185
    %v197 = vmul.f32 %v174, %v180
    %v198 = vmul.f32 %v174, %v185
    %v199 = vmul.f32 %v175, %v180
    %v200 = vmul.f32 %v175, %v185
    %v201 = vmul.f32 %v176, %v180
    %v202 = vmul.f32 %v176, %v185
    %v203 = vperm.slane %v153, 1
    %v204 = vperm.slane %v154, 1
    %v205 = vperm.slane %v155, 1
    %v206 = vperm.slane %v156, 1
    %v207 = vperm.slane %v157, 1
    %v208 = vperm.slane %v158, 1
    %v209 = vperm.slane %v159, 1
    %v210 = vperm.slane %v160, 1
    %212 = vset.pattern.permute.xlu0 0
    %213 = vperm.xlu0 %212, %v163
    %v214 = vpop.permute.xlu0 %213
    %217 = vset.pattern.permute.xlu0 0
    %218 = vperm.xlu0 %217, %v164
    %v219 = vpop.permute.xlu0 %218
    %v221 = vmul.f32 %v203, %v214
    %v222 = vmul.f32 %v203, %v219
    %v223 = vmul.f32 %v204, %v214
    %v224 = vmul.f32 %v204, %v219
    %v225 = vmul.f32 %v205, %v214
    %v226 = vmul.f32 %v205, %v219
    %v227 = vmul.f32 %v206, %v214
    %v228 = vmul.f32 %v206, %v219
    %v229 = vmul.f32 %v207, %v214
    %v230 = vmul.f32 %v207, %v219
    %v231 = vmul.f32 %v208, %v214
    %v232 = vmul.f32 %v208, %v219
    %v233 = vmul.f32 %v209, %v214
    %v234 = vmul.f32 %v209, %v219
    %v235 = vmul.f32 %v210, %v214
    %v236 = vmul.f32 %v210, %v219
    %v237 = vadd.f32 %v187, %v221
    %v238 = vadd.f32 %v188, %v222
    %v239 = vadd.f32 %v189, %v223
    %v240 = vadd.f32 %v190, %v224
    %v241 = vadd.f32 %v191, %v225
    %v242 = vadd.f32 %v192, %v226
    %v243 = vadd.f32 %v193, %v227
    %v244 = vadd.f32 %v194, %v228
    %v245 = vadd.f32 %v195, %v229
    %v246 = vadd.f32 %v196, %v230
    %v247 = vadd.f32 %v197, %v231
    %v248 = vadd.f32 %v198, %v232
    %v249 = vadd.f32 %v199, %v233
    %v250 = vadd.f32 %v200, %v234
    %v251 = vadd.f32 %v201, %v235
    %v252 = vadd.f32 %v202, %v236
    %v253 = vperm.slane %v153, 2
    %v254 = vperm.slane %v154, 2
    %v255 = vperm.slane %v155, 2
    %v256 = vperm.slane %v156, 2
    %v257 = vperm.slane %v157, 2
    %v258 = vperm.slane %v158, 2
    %v259 = vperm.slane %v159, 2
    %v260 = vperm.slane %v160, 2
    %262 = vset.pattern.permute.xlu0 0
    %263 = vperm.xlu0 %262, %v165
    %v264 = vpop.permute.xlu0 %263
    %267 = vset.pattern.permute.xlu0 0
    %268 = vperm.xlu0 %267, %v166
    %v269 = vpop.permute.xlu0 %268
    %v271 = vmul.f32 %v253, %v264
    %v272 = vmul.f32 %v253, %v269
    %v273 = vmul.f32 %v254, %v264
    %v274 = vmul.f32 %v254, %v269
    %v275 = vmul.f32 %v255, %v264
    %v276 = vmul.f32 %v255, %v269
    %v277 = vmul.f32 %v256, %v264
    %v278 = vmul.f32 %v256, %v269
    %v279 = vmul.f32 %v257, %v264
    %v280 = vmul.f32 %v257, %v269
    %v281 = vmul.f32 %v258, %v264
    %v282 = vmul.f32 %v258, %v269
    %v283 = vmul.f32 %v259, %v264
    %v284 = vmul.f32 %v259, %v269
    %v285 = vmul.f32 %v260, %v264
    %v286 = vmul.f32 %v260, %v269
    %v287 = vadd.f32 %v237, %v271
    %v288 = vadd.f32 %v238, %v272
    %v289 = vadd.f32 %v239, %v273
    %v290 = vadd.f32 %v240, %v274
    %v291 = vadd.f32 %v241, %v275
    %v292 = vadd.f32 %v242, %v276
    %v293 = vadd.f32 %v243, %v277
    %v294 = vadd.f32 %v244, %v278
    %v295 = vadd.f32 %v245, %v279
    %v296 = vadd.f32 %v246, %v280
    %v297 = vadd.f32 %v247, %v281
    %v298 = vadd.f32 %v248, %v282
    %v299 = vadd.f32 %v249, %v283
    %v300 = vadd.f32 %v250, %v284
    %v301 = vadd.f32 %v251, %v285
    %v302 = vadd.f32 %v252, %v286
    %v303 = vperm.slane %v153, 3
    %v304 = vperm.slane %v154, 3
    %v305 = vperm.slane %v155, 3
    %v306 = vperm.slane %v156, 3
    %v307 = vperm.slane %v157, 3
    %v308 = vperm.slane %v158, 3
    %v309 = vperm.slane %v159, 3
    %v310 = vperm.slane %v160, 3
    %312 = vset.pattern.permute.xlu0 0
    %313 = vperm.xlu0 %312, %v167
    %v314 = vpop.permute.xlu0 %313
    %317 = vset.pattern.permute.xlu0 0
    %318 = vperm.xlu0 %317, %v168
    %v319 = vpop.permute.xlu0 %318
    %v321 = vmul.f32 %v303, %v314
    %v322 = vmul.f32 %v303, %v319
    %v323 = vmul.f32 %v304, %v314
    %v324 = vmul.f32 %v304, %v319
    %v325 = vmul.f32 %v305, %v314
    %v326 = vmul.f32 %v305, %v319
    %v327 = vmul.f32 %v306, %v314
    %v328 = vmul.f32 %v306, %v319
    %v329 = vmul.f32 %v307, %v314
    %v330 = vmul.f32 %v307, %v319
    %v331 = vmul.f32 %v308, %v314
    %v332 = vmul.f32 %v308, %v319
    %v333 = vmul.f32 %v309, %v314
    %v334 = vmul.f32 %v309, %v319
    %v335 = vmul.f32 %v310, %v314
    %v336 = vmul.f32 %v310, %v319
    %v337 = vadd.f32 %v287, %v321
    %v338 = vadd.f32 %v288, %v322
    %v339 = vadd.f32 %v289, %v323
    %v340 = vadd.f32 %v290, %v324
    %v341 = vadd.f32 %v291, %v325
    %v342 = vadd.f32 %v292, %v326
    %v343 = vadd.f32 %v293, %v327
    %v344 = vadd.f32 %v294, %v328
    %v345 = vadd.f32 %v295, %v329
    %v346 = vadd.f32 %v296, %v330
    %v347 = vadd.f32 %v297, %v331
    %v348 = vadd.f32 %v298, %v332
    %v349 = vadd.f32 %v299, %v333
    %v350 = vadd.f32 %v300, %v334
    %v351 = vadd.f32 %v301, %v335
    %v352 = vadd.f32 %v302, %v336
    %v353 = vld [vmem:[%s2] sm:$0xff]
    %v354 = vld [vmem:[%s2 + $0x8] sm:$0xff]
    %356 = vset.pattern.permute.xlu0 0
    %357 = vperm.xlu0 %356, %v353
    %v358 = vpop.permute.xlu0 %357
    %361 = vset.pattern.permute.xlu0 0
    %362 = vperm.xlu0 %361, %v354
    %v363 = vpop.permute.xlu0 %362
    %v365 = vadd.f32 %v337, %v358
    %v366 = vadd.f32 %v338, %v363
    %v367 = vadd.f32 %v339, %v358
    %v368 = vadd.f32 %v340, %v363
    %v369 = vadd.f32 %v341, %v358
    %v370 = vadd.f32 %v342, %v363
    %v371 = vadd.f32 %v343, %v358
    %v372 = vadd.f32 %v344, %v363
    %v373 = vadd.f32 %v345, %v358
    %v374 = vadd.f32 %v346, %v363
    %v375 = vadd.f32 %v347, %v358
    %v376 = vadd.f32 %v348, %v363
    %v377 = vadd.f32 %v349, %v358
    %v378 = vadd.f32 %v350, %v363
    %v379 = vadd.f32 %v351, %v358
    %v380 = vadd.f32 %v352, %v363
    %v381 = vxor.u32 %v365, 2147483648
    %v382 = vxor.u32 %v366, 2147483648
    %v383 = vxor.u32 %v367, 2147483648
    %v384 = vxor.u32 %v368, 2147483648
    %v385 = vxor.u32 %v369, 2147483648
    %v386 = vxor.u32 %v370, 2147483648
    %v387 = vxor.u32 %v371, 2147483648
    %v388 = vxor.u32 %v372, 2147483648
    %v389 = vxor.u32 %v373, 2147483648
    %v390 = vxor.u32 %v374, 2147483648
    %v391 = vxor.u32 %v375, 2147483648
    %v392 = vxor.u32 %v376, 2147483648
    %v393 = vxor.u32 %v377, 2147483648
    %v394 = vxor.u32 %v378, 2147483648
    %v395 = vxor.u32 %v379, 2147483648
    %v396 = vxor.u32 %v380, 2147483648
    %v397 = vmul.f32 %v381, 1.442695
    %v398 = vpow.pop %v397
    %v399 = vmul.f32 %v382, 1.442695
    %v400 = vpow.pop %v399
    %v401 = vmul.f32 %v383, 1.442695
    %v402 = vpow.pop %v401
    %v403 = vmul.f32 %v384, 1.442695
    %v404 = vpow.pop %v403
    %v405 = vmul.f32 %v385, 1.442695
    %v406 = vpow.pop %v405
    %v407 = vmul.f32 %v386, 1.442695
    %v408 = vpow.pop %v407
    %v409 = vmul.f32 %v387, 1.442695
    %v410 = vpow.pop %v409
    %v411 = vmul.f32 %v388, 1.442695
    %v412 = vpow.pop %v411
    %v413 = vmul.f32 %v389, 1.442695
    %v414 = vpow.pop %v413
    %v415 = vmul.f32 %v390, 1.442695
    %v416 = vpow.pop %v415
    %v417 = vmul.f32 %v391, 1.442695
    %v418 = vpow.pop %v417
    %v419 = vmul.f32 %v392, 1.442695
    %v420 = vpow.pop %v419
    %v421 = vmul.f32 %v393, 1.442695
    %v422 = vpow.pop %v421
    %v423 = vmul.f32 %v394, 1.442695
    %v424 = vpow.pop %v423
    %v425 = vmul.f32 %v395, 1.442695
    %v426 = vpow.pop %v425
    %v427 = vmul.f32 %v396, 1.442695
    %v428 = vpow.pop %v427
    %v429 = vadd.f32 %v398, 1.0
    %v430 = vadd.f32 %v400, 1.0
    %v431 = vadd.f32 %v402, 1.0
    %v432 = vadd.f32 %v404, 1.0
    %v433 = vadd.f32 %v406, 1.0
    %v434 = vadd.f32 %v408, 1.0
    %v435 = vadd.f32 %v410, 1.0
    %v436 = vadd.f32 %v412, 1.0
    %v437 = vadd.f32 %v414, 1.0
    %v438 = vadd.f32 %v416, 1.0
    %v439 = vadd.f32 %v418, 1.0
    %v440 = vadd.f32 %v420, 1.0
    %v441 = vadd.f32 %v422, 1.0
    %v442 = vadd.f32 %v424, 1.0
    %v443 = vadd.f32 %v426, 1.0
    %v444 = vadd.f32 %v428, 1.0
    %v445 = vrcp.pop %v429
    %v446 = vmul.f32 %v429, %v445
    %v447 = vsub.f32 1.0, %v446
    %v448 = vmul.f32 %v445, %v447
    %v449 = vadd.f32 %v445, %v448
    %vm450 = vweird.f32 %v429
    %vm451 = vweird.f32 %v445
    %vm452 = vmor %vm450, %vm451
    %v453 = vsel %vm452, %v445, %v449
    %v454 = vand.u32 2147483647, %v429
    %vm455 = vcmp.eq.f32.partialorder %v454, 8.507059e+37
    %v456 = vand.u32 %v429, 2147483648
    %v457 = vor.u32 1.1754944e-38, %v456
    %v458 = vsel %vm455, %v457, %v453
    %v459 = vmul.f32 1.0, %v458
    %v460 = vrcp.pop %v430
    %v461 = vmul.f32 %v430, %v460
    %v462 = vsub.f32 1.0, %v461
    %v463 = vmul.f32 %v460, %v462
    %v464 = vadd.f32 %v460, %v463
    %vm465 = vweird.f32 %v430
    %vm466 = vweird.f32 %v460
    %vm467 = vmor %vm465, %vm466
    %v468 = vsel %vm467, %v460, %v464
    %v469 = vand.u32 2147483647, %v430
    %vm470 = vcmp.eq.f32.partialorder %v469, 8.507059e+37
    %v471 = vand.u32 %v430, 2147483648
    %v472 = vor.u32 1.1754944e-38, %v471
    %v473 = vsel %vm470, %v472, %v468
    %v474 = vmul.f32 1.0, %v473
    %v475 = vrcp.pop %v431
    %v476 = vmul.f32 %v431, %v475
    %v477 = vsub.f32 1.0, %v476
    %v478 = vmul.f32 %v475, %v477
    %v479 = vadd.f32 %v475, %v478
    %vm480 = vweird.f32 %v431
    %vm481 = vweird.f32 %v475
    %vm482 = vmor %vm480, %vm481
    %v483 = vsel %vm482, %v475, %v479
    %v484 = vand.u32 2147483647, %v431
    %vm485 = vcmp.eq.f32.partialorder %v484, 8.507059e+37
    %v486 = vand.u32 %v431, 2147483648
    %v487 = vor.u32 1.1754944e-38, %v486
    %v488 = vsel %vm485, %v487, %v483
    %v489 = vmul.f32 1.0, %v488
    %v490 = vrcp.pop %v432
    %v491 = vmul.f32 %v432, %v490
    %v492 = vsub.f32 1.0, %v491
    %v493 = vmul.f32 %v490, %v492
    %v494 = vadd.f32 %v490, %v493
    %vm495 = vweird.f32 %v432
    %vm496 = vweird.f32 %v490
    %vm497 = vmor %vm495, %vm496
    %v498 = vsel %vm497, %v490, %v494
    %v499 = vand.u32 2147483647, %v432
    %vm500 = vcmp.eq.f32.partialorder %v499, 8.507059e+37
    %v501 = vand.u32 %v432, 2147483648
    %v502 = vor.u32 1.1754944e-38, %v501
    %v503 = vsel %vm500, %v502, %v498
    %v504 = vmul.f32 1.0, %v503
    %v505 = vrcp.pop %v433
    %v506 = vmul.f32 %v433, %v505
    %v507 = vsub.f32 1.0, %v506
    %v508 = vmul.f32 %v505, %v507
    %v509 = vadd.f32 %v505, %v508
    %vm510 = vweird.f32 %v433
    %vm511 = vweird.f32 %v505
    %vm512 = vmor %vm510, %vm511
    %v513 = vsel %vm512, %v505, %v509
    %v514 = vand.u32 2147483647, %v433
    %vm515 = vcmp.eq.f32.partialorder %v514, 8.507059e+37
    %v516 = vand.u32 %v433, 2147483648
    %v517 = vor.u32 1.1754944e-38, %v516
    %v518 = vsel %vm515, %v517, %v513
    %v519 = vmul.f32 1.0, %v518
    %v520 = vrcp.pop %v434
    %v521 = vmul.f32 %v434, %v520
    %v522 = vsub.f32 1.0, %v521
    %v523 = vmul.f32 %v520, %v522
    %v524 = vadd.f32 %v520, %v523
    %vm525 = vweird.f32 %v434
    %vm526 = vweird.f32 %v520
    %vm527 = vmor %vm525, %vm526
    %v528 = vsel %vm527, %v520, %v524
    %v529 = vand.u32 2147483647, %v434
    %vm530 = vcmp.eq.f32.partialorder %v529, 8.507059e+37
    %v531 = vand.u32 %v434, 2147483648
    %v532 = vor.u32 1.1754944e-38, %v531
    %v533 = vsel %vm530, %v532, %v528
    %v534 = vmul.f32 1.0, %v533
    %v535 = vrcp.pop %v435
    %v536 = vmul.f32 %v435, %v535
    %v537 = vsub.f32 1.0, %v536
    %v538 = vmul.f32 %v535, %v537
    %v539 = vadd.f32 %v535, %v538
    %vm540 = vweird.f32 %v435
    %vm541 = vweird.f32 %v535
    %vm542 = vmor %vm540, %vm541
    %v543 = vsel %vm542, %v535, %v539
    %v544 = vand.u32 2147483647, %v435
    %vm545 = vcmp.eq.f32.partialorder %v544, 8.507059e+37
    %v546 = vand.u32 %v435, 2147483648
    %v547 = vor.u32 1.1754944e-38, %v546
    %v548 = vsel %vm545, %v547, %v543
    %v549 = vmul.f32 1.0, %v548
    %v550 = vrcp.pop %v436
    %v551 = vmul.f32 %v436, %v550
    %v552 = vsub.f32 1.0, %v551
    %v553 = vmul.f32 %v550, %v552
    %v554 = vadd.f32 %v550, %v553
    %vm555 = vweird.f32 %v436
    %vm556 = vweird.f32 %v550
    %vm557 = vmor %vm555, %vm556
    %v558 = vsel %vm557, %v550, %v554
    %v559 = vand.u32 2147483647, %v436
    %vm560 = vcmp.eq.f32.partialorder %v559, 8.507059e+37
    %v561 = vand.u32 %v436, 2147483648
    %v562 = vor.u32 1.1754944e-38, %v561
    %v563 = vsel %vm560, %v562, %v558
    %v564 = vmul.f32 1.0, %v563
    %v565 = vrcp.pop %v437
    %v566 = vmul.f32 %v437, %v565
    %v567 = vsub.f32 1.0, %v566
    %v568 = vmul.f32 %v565, %v567
    %v569 = vadd.f32 %v565, %v568
    %vm570 = vweird.f32 %v437
    %vm571 = vweird.f32 %v565
    %vm572 = vmor %vm570, %vm571
    %v573 = vsel %vm572, %v565, %v569
    %v574 = vand.u32 2147483647, %v437
    %vm575 = vcmp.eq.f32.partialorder %v574, 8.507059e+37
    %v576 = vand.u32 %v437, 2147483648
    %v577 = vor.u32 1.1754944e-38, %v576
    %v578 = vsel %vm575, %v577, %v573
    %v579 = vmul.f32 1.0, %v578
    %v580 = vrcp.pop %v438
    %v581 = vmul.f32 %v438, %v580
    %v582 = vsub.f32 1.0, %v581
    %v583 = vmul.f32 %v580, %v582
    %v584 = vadd.f32 %v580, %v583
    %vm585 = vweird.f32 %v438
    %vm586 = vweird.f32 %v580
    %vm587 = vmor %vm585, %vm586
    %v588 = vsel %vm587, %v580, %v584
    %v589 = vand.u32 2147483647, %v438
    %vm590 = vcmp.eq.f32.partialorder %v589, 8.507059e+37
    %v591 = vand.u32 %v438, 2147483648
    %v592 = vor.u32 1.1754944e-38, %v591
    %v593 = vsel %vm590, %v592, %v588
    %v594 = vmul.f32 1.0, %v593
    %v595 = vrcp.pop %v439
    %v596 = vmul.f32 %v439, %v595
    %v597 = vsub.f32 1.0, %v596
    %v598 = vmul.f32 %v595, %v597
    %v599 = vadd.f32 %v595, %v598
    %vm600 = vweird.f32 %v439
    %vm601 = vweird.f32 %v595
    %vm602 = vmor %vm600, %vm601
    %v603 = vsel %vm602, %v595, %v599
    %v604 = vand.u32 2147483647, %v439
    %vm605 = vcmp.eq.f32.partialorder %v604, 8.507059e+37
    %v606 = vand.u32 %v439, 2147483648
    %v607 = vor.u32 1.1754944e-38, %v606
    %v608 = vsel %vm605, %v607, %v603
    %v609 = vmul.f32 1.0, %v608
    %v610 = vrcp.pop %v440
    %v611 = vmul.f32 %v440, %v610
    %v612 = vsub.f32 1.0, %v611
    %v613 = vmul.f32 %v610, %v612
    %v614 = vadd.f32 %v610, %v613
    %vm615 = vweird.f32 %v440
    %vm616 = vweird.f32 %v610
    %vm617 = vmor %vm615, %vm616
    %v618 = vsel %vm617, %v610, %v614
    %v619 = vand.u32 2147483647, %v440
    %vm620 = vcmp.eq.f32.partialorder %v619, 8.507059e+37
    %v621 = vand.u32 %v440, 2147483648
    %v622 = vor.u32 1.1754944e-38, %v621
    %v623 = vsel %vm620, %v622, %v618
    %v624 = vmul.f32 1.0, %v623
    %v625 = vrcp.pop %v441
    %v626 = vmul.f32 %v441, %v625
    %v627 = vsub.f32 1.0, %v626
    %v628 = vmul.f32 %v625, %v627
    %v629 = vadd.f32 %v625, %v628
    %vm630 = vweird.f32 %v441
    %vm631 = vweird.f32 %v625
    %vm632 = vmor %vm630, %vm631
    %v633 = vsel %vm632, %v625, %v629
    %v634 = vand.u32 2147483647, %v441
    %vm635 = vcmp.eq.f32.partialorder %v634, 8.507059e+37
    %v636 = vand.u32 %v441, 2147483648
    %v637 = vor.u32 1.1754944e-38, %v636
    %v638 = vsel %vm635, %v637, %v633
    %v639 = vmul.f32 1.0, %v638
    %v640 = vrcp.pop %v442
    %v641 = vmul.f32 %v442, %v640
    %v642 = vsub.f32 1.0, %v641
    %v643 = vmul.f32 %v640, %v642
    %v644 = vadd.f32 %v640, %v643
    %vm645 = vweird.f32 %v442
    %vm646 = vweird.f32 %v640
    %vm647 = vmor %vm645, %vm646
    %v648 = vsel %vm647, %v640, %v644
    %v649 = vand.u32 2147483647, %v442
    %vm650 = vcmp.eq.f32.partialorder %v649, 8.507059e+37
    %v651 = vand.u32 %v442, 2147483648
    %v652 = vor.u32 1.1754944e-38, %v651
    %v653 = vsel %vm650, %v652, %v648
    %v654 = vmul.f32 1.0, %v653
    %v655 = vrcp.pop %v443
    %v656 = vmul.f32 %v443, %v655
    %v657 = vsub.f32 1.0, %v656
    %v658 = vmul.f32 %v655, %v657
    %v659 = vadd.f32 %v655, %v658
    %vm660 = vweird.f32 %v443
    %vm661 = vweird.f32 %v655
    %vm662 = vmor %vm660, %vm661
    %v663 = vsel %vm662, %v655, %v659
    %v664 = vand.u32 2147483647, %v443
    %vm665 = vcmp.eq.f32.partialorder %v664, 8.507059e+37
    %v666 = vand.u32 %v443, 2147483648
    %v667 = vor.u32 1.1754944e-38, %v666
    %v668 = vsel %vm665, %v667, %v663
    %v669 = vmul.f32 1.0, %v668
    %v670 = vrcp.pop %v444
    %v671 = vmul.f32 %v444, %v670
    %v672 = vsub.f32 1.0, %v671
    %v673 = vmul.f32 %v670, %v672
    %v674 = vadd.f32 %v670, %v673
    %vm675 = vweird.f32 %v444
    %vm676 = vweird.f32 %v670
    %vm677 = vmor %vm675, %vm676
    %v678 = vsel %vm677, %v670, %v674
    %v679 = vand.u32 2147483647, %v444
    %vm680 = vcmp.eq.f32.partialorder %v679, 8.507059e+37
    %v681 = vand.u32 %v444, 2147483648
    %v682 = vor.u32 1.1754944e-38, %v681
    %v683 = vsel %vm680, %v682, %v678
    %v684 = vmul.f32 1.0, %v683
    %v685 = vadd.f32 %v459, %v474
    %v686 = vrot.slane %v685, 4
    %v687 = vadd.f32 %v685, %v686
    %v688 = vrot.slane %v687, 2
    %v689 = vadd.f32 %v687, %v688
    %v690 = vrot.slane %v689, 1
    %v691 = vadd.f32 %v689, %v690
    %v692 = vadd.f32 %v489, %v504
    %v693 = vrot.slane %v692, 4
    %v694 = vadd.f32 %v692, %v693
    %v695 = vrot.slane %v694, 2
    %v696 = vadd.f32 %v694, %v695
    %v697 = vrot.slane %v696, 1
    %v698 = vadd.f32 %v696, %v697
    %v699 = vadd.f32 %v519, %v534
    %v700 = vrot.slane %v699, 4
    %v701 = vadd.f32 %v699, %v700
    %v702 = vrot.slane %v701, 2
    %v703 = vadd.f32 %v701, %v702
    %v704 = vrot.slane %v703, 1
    %v705 = vadd.f32 %v703, %v704
    %v706 = vadd.f32 %v549, %v564
    %v707 = vrot.slane %v706, 4
    %v708 = vadd.f32 %v706, %v707
    %v709 = vrot.slane %v708, 2
    %v710 = vadd.f32 %v708, %v709
    %v711 = vrot.slane %v710, 1
    %v712 = vadd.f32 %v710, %v711
    %v713 = vadd.f32 %v579, %v594
    %v714 = vrot.slane %v713, 4
    %v715 = vadd.f32 %v713, %v714
    %v716 = vrot.slane %v715, 2
    %v717 = vadd.f32 %v715, %v716
    %v718 = vrot.slane %v717, 1
    %v719 = vadd.f32 %v717, %v718
    %v720 = vadd.f32 %v609, %v624
    %v721 = vrot.slane %v720, 4
    %v722 = vadd.f32 %v720, %v721
    %v723 = vrot.slane %v722, 2
    %v724 = vadd.f32 %v722, %v723
    %v725 = vrot.slane %v724, 1
    %v726 = vadd.f32 %v724, %v725
    %v727 = vadd.f32 %v639, %v654
    %v728 = vrot.slane %v727, 4
    %v729 = vadd.f32 %v727, %v728
    %v730 = vrot.slane %v729, 2
    %v731 = vadd.f32 %v729, %v730
    %v732 = vrot.slane %v731, 1
    %v733 = vadd.f32 %v731, %v732
    %v734 = vadd.f32 %v669, %v684
    %v735 = vrot.slane %v734, 4
    %v736 = vadd.f32 %v734, %v735
    %v737 = vrot.slane %v736, 2
    %v738 = vadd.f32 %v736, %v737
    %v739 = vrot.slane %v738, 1
    %v740 = vadd.f32 %v738, %v739
    %v741 = vrcp.pop 16.0
    %v742 = vmul.f32 16.0, %v741
    %v743 = vsub.f32 1.0, %v742
    %v744 = vmul.f32 %v741, %v743
    %v745 = vadd.f32 %v741, %v744
    %vm746 = vweird.f32 %v741
    %v747 = vsel %vm746, %v741, %v745
    %v748 = vmul.f32 %v691, %v747
    %v749 = vmul.f32 %v698, %v747
    %v750 = vmul.f32 %v705, %v747
    %v751 = vmul.f32 %v712, %v747
    %v752 = vmul.f32 %v719, %v747
    %v753 = vmul.f32 %v726, %v747
    %v754 = vmul.f32 %v733, %v747
    %v755 = vmul.f32 %v740, %v747
    %v756 = vld [vmem:[%s3] sm:$0xff]
    %v757 = vld [vmem:[%s3 + $0x8] sm:$0xff]
    %v758 = vld [vmem:[%s3 + $0x10] sm:$0xff]
    %v759 = vld [vmem:[%s3 + $0x18] sm:$0xff]
    %v760 = vld [vmem:[%s3 + $0x20] sm:$0xff]
    %v761 = vld [vmem:[%s3 + $0x28] sm:$0xff]
    %v762 = vld [vmem:[%s3 + $0x30] sm:$0xff]
    %v763 = vld [vmem:[%s3 + $0x38] sm:$0xff]
    %v764 = vld [vmem:[%s3 + $0x40] sm:$0xff]
    %v765 = vld [vmem:[%s3 + $0x48] sm:$0xff]
    %v766 = vld [vmem:[%s3 + $0x50] sm:$0xff]
    %v767 = vld [vmem:[%s3 + $0x58] sm:$0xff]
    %v768 = vld [vmem:[%s3 + $0x60] sm:$0xff]
    %v769 = vld [vmem:[%s3 + $0x68] sm:$0xff]
    %v770 = vld [vmem:[%s3 + $0x70] sm:$0xff]
    %v771 = vld [vmem:[%s3 + $0x78] sm:$0xff]
    %v772 = vld [vmem:[#allocation5] sm:$0x1]
    %v774 = vperm.slane %v772, 0
    %vm784 = vcmask 1041409
    %v785 = vsel %vm784, %v749, %v748
    %vm786 = vcmask 1042434
    %v787 = vsel %vm786, %v750, %v785
    %vm788 = vcmask 1043459
    %v789 = vsel %vm788, %v751, %v787
    %vm790 = vcmask 1044484
    %v791 = vsel %vm790, %v752, %v789
    %vm792 = vcmask 1045509
    %v793 = vsel %vm792, %v753, %v791
    %vm794 = vcmask 1046534
    %v795 = vsel %vm794, %v754, %v793
    %vm796 = vcmask 1047559
    %v797 = vsel %vm796, %v755, %v795
    %799 = vmatpush.msra.mxu0 %v771
    %800 = vmatpush.msra.mxu0 %v770
    %801 = vmatpush.msra.mxu0 %v769
    %802 = vmatpush.msra.mxu0 %v768
    %803 = vmatpush.msra.mxu0 %v767
    %804 = vmatpush.msra.mxu0 %v766
    %805 = vmatpush.msra.mxu0 %v765
    %806 = vmatpush.msra.mxu0 %v764
    %807 = vmatpush.msra.mxu0 %v763
    %808 = vmatpush.msra.mxu0 %v762
    %809 = vmatpush.msra.mxu0 %v761
    %810 = vmatpush.msra.mxu0 %v760
    %811 = vmatpush.msra.mxu0 %v759
    %812 = vmatpush.msra.mxu0 %v758
    %813 = vmatpush.msra.mxu0 %v757
    %814 = vmatpush.msra.mxu0 %v756
    %815 = vmatmul.f32.gmra.mxu0 %v797
    %v816 = vpop.f32.mrf.mxu0
    %v817 = vadd.f32 %v774, %v816
    %818 = vdwg.mxu0
    %819 = vmax.xlane.f32.xlu0 %v817
    %v820 = vpop.xlane.xlu0 %819
    %v821 = vsub.f32 %v817, %v820
    %v822 = vmul.f32 %v821, 1.442695
    %v823 = vpow.pop %v822
    %824 = vadd.xlane.f32.xlu0 %v823
    %v825 = vpop.xlane.xlu0 %824
    %v826 = vrcp.pop %v825
    %v827 = vmul.f32 %v823, %v826
    %v829 = vrot.slane %v827, 1
    %v830 = vrot.slane %v827, 2
    %v831 = vrot.slane %v827, 3
    %v832 = vrot.slane %v827, 4
    %v833 = vrot.slane %v827, 5
    %v834 = vrot.slane %v827, 6
    %v835 = vrot.slane %v827, 7
    %v836 = vperm.slane %v827, 0
    %v837 = vperm.slane %v829, 0
    %v838 = vperm.slane %v830, 0
    %v839 = vperm.slane %v831, 0
    %v840 = vperm.slane %v832, 0
    %v841 = vperm.slane %v833, 0
    %v842 = vperm.slane %v834, 0
    %v843 = vperm.slane %v835, 0
    %v852 = vmul.f32 %v459, %v836
    %v853 = vmul.f32 %v474, %v836
    %v854 = vmul.f32 %v489, %v837
    %v855 = vmul.f32 %v504, %v837
    %v856 = vmul.f32 %v519, %v838
    %v857 = vmul.f32 %v534, %v838
    %v858 = vmul.f32 %v549, %v839
    %v859 = vmul.f32 %v564, %v839
    %v860 = vmul.f32 %v579, %v840
    %v861 = vmul.f32 %v594, %v840
    %v862 = vmul.f32 %v609, %v841
    %v863 = vmul.f32 %v624, %v841
    %v864 = vmul.f32 %v639, %v842
    %v865 = vmul.f32 %v654, %v842
    %v866 = vmul.f32 %v669, %v843
    %v867 = vmul.f32 %v684, %v843
    %868 = vadd.xlane.f32.xlu0 %v852
    %v869 = vpop.xlane.xlu0 %868
    %870 = vadd.xlane.f32.xlu0 %v853
    %v871 = vpop.xlane.xlu0 %870
    %872 = vadd.xlane.f32.xlu0 %v854
    %v873 = vpop.xlane.xlu0 %872
    %874 = vadd.xlane.f32.xlu0 %v855
    %v875 = vpop.xlane.xlu0 %874
    %876 = vadd.xlane.f32.xlu0 %v856
    %v877 = vpop.xlane.xlu0 %876
    %878 = vadd.xlane.f32.xlu0 %v857
    %v879 = vpop.xlane.xlu0 %878
    %880 = vadd.xlane.f32.xlu0 %v858
    %v881 = vpop.xlane.xlu0 %880
    %882 = vadd.xlane.f32.xlu0 %v859
    %v883 = vpop.xlane.xlu0 %882
    %884 = vadd.xlane.f32.xlu0 %v860
    %v885 = vpop.xlane.xlu0 %884
    %886 = vadd.xlane.f32.xlu0 %v861
    %v887 = vpop.xlane.xlu0 %886
    %888 = vadd.xlane.f32.xlu0 %v862
    %v889 = vpop.xlane.xlu0 %888
    %890 = vadd.xlane.f32.xlu0 %v863
    %v891 = vpop.xlane.xlu0 %890
    %892 = vadd.xlane.f32.xlu0 %v864
    %v893 = vpop.xlane.xlu0 %892
    %894 = vadd.xlane.f32.xlu0 %v865
    %v895 = vpop.xlane.xlu0 %894
    %896 = vadd.xlane.f32.xlu0 %v866
    %v897 = vpop.xlane.xlu0 %896
    %898 = vadd.xlane.f32.xlu0 %v867
    %v899 = vpop.xlane.xlu0 %898
    %v900 = vrcp.pop 128.0
    %v901 = vmul.f32 128.0, %v900
    %v902 = vsub.f32 1.0, %v901
    %v903 = vmul.f32 %v900, %v902
    %v904 = vadd.f32 %v900, %v903
    %vm905 = vweird.f32 %v900
    %v906 = vsel %vm905, %v900, %v904
    %v907 = vmul.f32 %v869, %v906
    %v908 = vmul.f32 %v871, %v906
    %v909 = vmul.f32 %v873, %v906
    %v910 = vmul.f32 %v875, %v906
    %v911 = vmul.f32 %v877, %v906
    %v912 = vmul.f32 %v879, %v906
    %v913 = vmul.f32 %v881, %v906
    %v914 = vmul.f32 %v883, %v906
    %v915 = vmul.f32 %v885, %v906
    %v916 = vmul.f32 %v887, %v906
    %v917 = vmul.f32 %v889, %v906
    %v918 = vmul.f32 %v891, %v906
    %v919 = vmul.f32 %v893, %v906
    %v920 = vmul.f32 %v895, %v906
    %v921 = vmul.f32 %v897, %v906
    %v922 = vmul.f32 %v899, %v906
    %v923 = vld [vmem:[%s5] sm:$0xff]
    %v924 = vld [vmem:[%s5 + $0x8] sm:$0xff]
    %v925 = vld [vmem:[#allocation7] sm:$0x1]
    %v927 = vperm.slane %v925, 0
    %v945 = vlaneseq
    %v946 = vand.u32 %v945, 127
    %v947 = vperm.slane %v907, %v946
    %v948 = vadd.s32 %v946, 4294967288
    %v949 = vperm.slane %v908, %v948
    %vm950 = vcmask 130112
    %v951 = vsel %vm950, %v949, %v947
    %v952 = vperm.slane %v909, %v946
    %v953 = vperm.slane %v910, %v948
    %v954 = vsel %vm950, %v953, %v952
    %v955 = vperm.slane %v911, %v946
    %v956 = vperm.slane %v912, %v948
    %v957 = vsel %vm950, %v956, %v955
    %v958 = vperm.slane %v913, %v946
    %v959 = vperm.slane %v914, %v948
    %v960 = vsel %vm950, %v959, %v958
    %v961 = vperm.slane %v915, %v946
    %v962 = vperm.slane %v916, %v948
    %v963 = vsel %vm950, %v962, %v961
    %v964 = vperm.slane %v917, %v946
    %v965 = vperm.slane %v918, %v948
    %v966 = vsel %vm950, %v965, %v964
    %v967 = vperm.slane %v919, %v946
    %v968 = vperm.slane %v920, %v948
    %v969 = vsel %vm950, %v968, %v967
    %v970 = vperm.slane %v921, %v946
    %v971 = vperm.slane %v922, %v948
    %v972 = vsel %vm950, %v971, %v970
    %v973 = vsel %vm784, %v954, %v951
    %v974 = vsel %vm786, %v957, %v973
    %v975 = vsel %vm788, %v960, %v974
    %v976 = vsel %vm790, %v963, %v975
    %v977 = vsel %vm792, %v966, %v976
    %v978 = vsel %vm794, %v969, %v977
    %v979 = vsel %vm796, %v972, %v978
    %vm980 = vcmask 130048
    %v981 = vsel %vm980, %v979, 0
    %983 = vmatpush.msra.mxu0 0.0
    %984 = vmatpush.msra.mxu0 0.0
    %985 = vmatpush.msra.mxu0 0.0
    %986 = vmatpush.msra.mxu0 0.0
    %987 = vmatpush.msra.mxu0 0.0
    %988 = vmatpush.msra.mxu0 0.0
    %989 = vmatpush.msra.mxu0 0.0
    %990 = vmatpush.msra.mxu0 0.0
    %991 = vmatpush.msra.mxu0 0.0
    %992 = vmatpush.msra.mxu0 0.0
    %993 = vmatpush.msra.mxu0 0.0
    %994 = vmatpush.msra.mxu0 0.0
    %995 = vmatpush.msra.mxu0 0.0
    %996 = vmatpush.msra.mxu0 0.0
    %997 = vmatpush.msra.mxu0 %v924
    %998 = vmatpush.msra.mxu0 %v923
    %999 = vmatmul.f32.gmra.mxu0 %v981
    %v1000 = vpop.f32.mrf.mxu0
    %v1001 = vadd.f32 %v927, %v1000
    %1002 = vdwg.mxu0
    %v1003 = vsel %vm980, %v1001, -inf
    %1004 = vmax.xlane.f32.xlu0 %v1003
    %v1005 = vpop.xlane.xlu0 %1004
    %v1006 = vsub.f32 %v1001, %v1005
    %v1007 = vmul.f32 %v1006, 1.442695
    %v1008 = vpow.pop %v1007
    %v1009 = vsel %vm980, %v1008, 0.0
    %1010 = vadd.xlane.f32.xlu0 %v1009
    %v1011 = vpop.xlane.xlu0 %1010
    %v1012 = vrcp.pop %v1011
    %v1013 = vmul.f32 %v1008, %v1012
    %1014 = vmax.xlane.f32.xlu0 %v852
    %v1015 = vpop.xlane.xlu0 %1014
    %1016 = vmax.xlane.f32.xlu0 %v853
    %v1017 = vpop.xlane.xlu0 %1016
    %1018 = vmax.xlane.f32.xlu0 %v854
    %v1019 = vpop.xlane.xlu0 %1018
    %1020 = vmax.xlane.f32.xlu0 %v855
    %v1021 = vpop.xlane.xlu0 %1020
    %1022 = vmax.xlane.f32.xlu0 %v856
    %v1023 = vpop.xlane.xlu0 %1022
    %1024 = vmax.xlane.f32.xlu0 %v857
    %v1025 = vpop.xlane.xlu0 %1024
    %1026 = vmax.xlane.f32.xlu0 %v858
    %v1027 = vpop.xlane.xlu0 %1026
    %1028 = vmax.xlane.f32.xlu0 %v859
    %v1029 = vpop.xlane.xlu0 %1028
    %1030 = vmax.xlane.f32.xlu0 %v860
    %v1031 = vpop.xlane.xlu0 %1030
    %1032 = vmax.xlane.f32.xlu0 %v861
    %v1033 = vpop.xlane.xlu0 %1032
    %1034 = vmax.xlane.f32.xlu0 %v862
    %v1035 = vpop.xlane.xlu0 %1034
    %1036 = vmax.xlane.f32.xlu0 %v863
    %v1037 = vpop.xlane.xlu0 %1036
    %1038 = vmax.xlane.f32.xlu0 %v864
    %v1039 = vpop.xlane.xlu0 %1038
    %1040 = vmax.xlane.f32.xlu0 %v865
    %v1041 = vpop.xlane.xlu0 %1040
    %1042 = vmax.xlane.f32.xlu0 %v866
    %v1043 = vpop.xlane.xlu0 %1042
    %1044 = vmax.xlane.f32.xlu0 %v867
    %v1045 = vpop.xlane.xlu0 %1044
    %v1047 = vperm.slane %v1013, 0
    %v1048 = vlaneseq
    %v1049 = vshrl.u32 %v1048, 7
    %1051 = vset.pattern.permute.xlu0 %v1049
    %1052 = vperm.xlu0 %1051, %v1047
    %v1053 = vpop.permute.xlu0 %1052
    %v1054 = vlaneseq
    %v1055 = vshrl.u32 %v1054, 7
    %v1056 = vadd.s32 %v1055, 8
    %1057 = vset.pattern.permute.xlu0 %v1056
    %1058 = vperm.xlu0 %1057, %v1047
    %v1059 = vpop.permute.xlu0 %1058
    %v1060 = vperm.slane %v1013, 1
    %v1061 = vlaneseq
    %v1062 = vshrl.u32 %v1061, 7
    %1064 = vset.pattern.permute.xlu0 %v1062
    %1065 = vperm.xlu0 %1064, %v1060
    %v1066 = vpop.permute.xlu0 %1065
    %v1067 = vlaneseq
    %v1068 = vshrl.u32 %v1067, 7
    %v1069 = vadd.s32 %v1068, 8
    %1070 = vset.pattern.permute.xlu0 %v1069
    %1071 = vperm.xlu0 %1070, %v1060
    %v1072 = vpop.permute.xlu0 %1071
    %v1073 = vperm.slane %v1013, 2
    %v1074 = vlaneseq
    %v1075 = vshrl.u32 %v1074, 7
    %1077 = vset.pattern.permute.xlu0 %v1075
    %1078 = vperm.xlu0 %1077, %v1073
    %v1079 = vpop.permute.xlu0 %1078
    %v1080 = vlaneseq
    %v1081 = vshrl.u32 %v1080, 7
    %v1082 = vadd.s32 %v1081, 8
    %1083 = vset.pattern.permute.xlu0 %v1082
    %1084 = vperm.xlu0 %1083, %v1073
    %v1085 = vpop.permute.xlu0 %1084
    %v1086 = vperm.slane %v1013, 3
    %v1087 = vlaneseq
    %v1088 = vshrl.u32 %v1087, 7
    %1090 = vset.pattern.permute.xlu0 %v1088
    %1091 = vperm.xlu0 %1090, %v1086
    %v1092 = vpop.permute.xlu0 %1091
    %v1093 = vlaneseq
    %v1094 = vshrl.u32 %v1093, 7
    %v1095 = vadd.s32 %v1094, 8
    %1096 = vset.pattern.permute.xlu0 %v1095
    %1097 = vperm.xlu0 %1096, %v1086
    %v1098 = vpop.permute.xlu0 %1097
    %v1099 = vperm.slane %v1013, 4
    %v1100 = vlaneseq
    %v1101 = vshrl.u32 %v1100, 7
    %1103 = vset.pattern.permute.xlu0 %v1101
    %1104 = vperm.xlu0 %1103, %v1099
    %v1105 = vpop.permute.xlu0 %1104
    %v1106 = vlaneseq
    %v1107 = vshrl.u32 %v1106, 7
    %v1108 = vadd.s32 %v1107, 8
    %1109 = vset.pattern.permute.xlu0 %v1108
    %1110 = vperm.xlu0 %1109, %v1099
    %v1111 = vpop.permute.xlu0 %1110
    %v1112 = vperm.slane %v1013, 5
    %v1113 = vlaneseq
    %v1114 = vshrl.u32 %v1113, 7
    %1116 = vset.pattern.permute.xlu0 %v1114
    %1117 = vperm.xlu0 %1116, %v1112
    %v1118 = vpop.permute.xlu0 %1117
    %v1119 = vlaneseq
    %v1120 = vshrl.u32 %v1119, 7
    %v1121 = vadd.s32 %v1120, 8
    %1122 = vset.pattern.permute.xlu0 %v1121
    %1123 = vperm.xlu0 %1122, %v1112
    %v1124 = vpop.permute.xlu0 %1123
    %v1125 = vperm.slane %v1013, 6
    %v1126 = vlaneseq
    %v1127 = vshrl.u32 %v1126, 7
    %1129 = vset.pattern.permute.xlu0 %v1127
    %1130 = vperm.xlu0 %1129, %v1125
    %v1131 = vpop.permute.xlu0 %1130
    %v1132 = vlaneseq
    %v1133 = vshrl.u32 %v1132, 7
    %v1134 = vadd.s32 %v1133, 8
    %1135 = vset.pattern.permute.xlu0 %v1134
    %1136 = vperm.xlu0 %1135, %v1125
    %v1137 = vpop.permute.xlu0 %1136
    %v1138 = vperm.slane %v1013, 7
    %v1139 = vlaneseq
    %v1140 = vshrl.u32 %v1139, 7
    %1142 = vset.pattern.permute.xlu0 %v1140
    %1143 = vperm.xlu0 %1142, %v1138
    %v1144 = vpop.permute.xlu0 %1143
    %v1145 = vlaneseq
    %v1146 = vshrl.u32 %v1145, 7
    %v1147 = vadd.s32 %v1146, 8
    %1148 = vset.pattern.permute.xlu0 %v1147
    %1149 = vperm.xlu0 %1148, %v1138
    %v1150 = vpop.permute.xlu0 %1149
    %v1167 = vmul.f32 %v1015, %v1053
    %v1168 = vmul.f32 %v1017, %v1059
    %v1169 = vmul.f32 %v1019, %v1066
    %v1170 = vmul.f32 %v1021, %v1072
    %v1171 = vmul.f32 %v1023, %v1079
    %v1172 = vmul.f32 %v1025, %v1085
    %v1173 = vmul.f32 %v1027, %v1092
    %v1174 = vmul.f32 %v1029, %v1098
    %v1175 = vmul.f32 %v1031, %v1105
    %v1176 = vmul.f32 %v1033, %v1111
    %v1177 = vmul.f32 %v1035, %v1118
    %v1178 = vmul.f32 %v1037, %v1124
    %v1179 = vmul.f32 %v1039, %v1131
    %v1180 = vmul.f32 %v1041, %v1137
    %v1181 = vmul.f32 %v1043, %v1144
    %v1182 = vmul.f32 %v1045, %v1150
    %v1183 = vld [vmem:[#allocation8] sm:$0xff]
    %v1184 = vld [vmem:[#allocation8 + $0x8] sm:$0xff]
    %v1185 = vld [vmem:[#allocation10] sm:$0x1]
    %v1187 = vperm.slane %v1185, 0
    %1205 = vset.pattern.permute.xlu0 0
    %1206 = vperm.xlu0 %1205, %v1167
    %v1207 = vpop.permute.xlu0 %1206
    %1208 = vset.pattern.permute.xlu0 0
    %1209 = vperm.xlu0 %1208, %v1168
    %v1210 = vpop.permute.xlu0 %1209
    %1211 = vset.pattern.permute.xlu0 0
    %1212 = vperm.xlu0 %1211, %v1169
    %v1213 = vpop.permute.xlu0 %1212
    %1214 = vset.pattern.permute.xlu0 0
    %1215 = vperm.xlu0 %1214, %v1170
    %v1216 = vpop.permute.xlu0 %1215
    %1217 = vset.pattern.permute.xlu0 0
    %1218 = vperm.xlu0 %1217, %v1171
    %v1219 = vpop.permute.xlu0 %1218
    %1220 = vset.pattern.permute.xlu0 0
    %1221 = vperm.xlu0 %1220, %v1172
    %v1222 = vpop.permute.xlu0 %1221
    %1223 = vset.pattern.permute.xlu0 0
    %1224 = vperm.xlu0 %1223, %v1173
    %v1225 = vpop.permute.xlu0 %1224
    %1226 = vset.pattern.permute.xlu0 0
    %1227 = vperm.xlu0 %1226, %v1174
    %v1228 = vpop.permute.xlu0 %1227
    %1229 = vset.pattern.permute.xlu0 0
    %1230 = vperm.xlu0 %1229, %v1175
    %v1231 = vpop.permute.xlu0 %1230
    %1232 = vset.pattern.permute.xlu0 0
    %1233 = vperm.xlu0 %1232, %v1176
    %v1234 = vpop.permute.xlu0 %1233
    %1235 = vset.pattern.permute.xlu0 0
    %1236 = vperm.xlu0 %1235, %v1177
    %v1237 = vpop.permute.xlu0 %1236
    %1238 = vset.pattern.permute.xlu0 0
    %1239 = vperm.xlu0 %1238, %v1178
    %v1240 = vpop.permute.xlu0 %1239
    %1241 = vset.pattern.permute.xlu0 0
    %1242 = vperm.xlu0 %1241, %v1179
    %v1243 = vpop.permute.xlu0 %1242
    %1244 = vset.pattern.permute.xlu0 0
    %1245 = vperm.xlu0 %1244, %v1180
    %v1246 = vpop.permute.xlu0 %1245
    %1247 = vset.pattern.permute.xlu0 0
    %1248 = vperm.xlu0 %1247, %v1181
    %v1249 = vpop.permute.xlu0 %1248
    %1250 = vset.pattern.permute.xlu0 0
    %1251 = vperm.xlu0 %1250, %v1182
    %v1252 = vpop.permute.xlu0 %1251
    %v1253 = vperm.slane %v1207, %v946
    %v1254 = vperm.slane %v1210, %v948
    %v1255 = vsel %vm950, %v1254, %v1253
    %v1256 = vperm.slane %v1213, %v946
    %v1257 = vperm.slane %v1216, %v948
    %v1258 = vsel %vm950, %v1257, %v1256
    %v1259 = vperm.slane %v1219, %v946
    %v1260 = vperm.slane %v1222, %v948
    %v1261 = vsel %vm950, %v1260, %v1259
    %v1262 = vperm.slane %v1225, %v946
    %v1263 = vperm.slane %v1228, %v948
    %v1264 = vsel %vm950, %v1263, %v1262
    %v1265 = vperm.slane %v1231, %v946
    %v1266 = vperm.slane %v1234, %v948
    %v1267 = vsel %vm950, %v1266, %v1265
    %v1268 = vperm.slane %v1237, %v946
    %v1269 = vperm.slane %v1240, %v948
    %v1270 = vsel %vm950, %v1269, %v1268
    %v1271 = vperm.slane %v1243, %v946
    %v1272 = vperm.slane %v1246, %v948
    %v1273 = vsel %vm950, %v1272, %v1271
    %v1274 = vperm.slane %v1249, %v946
    %v1275 = vperm.slane %v1252, %v948
    %v1276 = vsel %vm950, %v1275, %v1274
    %v1277 = vsel %vm784, %v1258, %v1255
    %v1278 = vsel %vm786, %v1261, %v1277
    %v1279 = vsel %vm788, %v1264, %v1278
    %v1280 = vsel %vm790, %v1267, %v1279
    %v1281 = vsel %vm792, %v1270, %v1280
    %v1282 = vsel %vm794, %v1273, %v1281
    %v1283 = vsel %vm796, %v1276, %v1282
    %v1284 = vsel %vm980, %v1283, 0
    %1286 = vmatpush.msra.mxu0 0.0
    %1287 = vmatpush.msra.mxu0 0.0
    %1288 = vmatpush.msra.mxu0 0.0
    %1289 = vmatpush.msra.mxu0 0.0
    %1290 = vmatpush.msra.mxu0 0.0
    %1291 = vmatpush.msra.mxu0 0.0
    %1292 = vmatpush.msra.mxu0 0.0
    %1293 = vmatpush.msra.mxu0 0.0
    %1294 = vmatpush.msra.mxu0 0.0
    %1295 = vmatpush.msra.mxu0 0.0
    %1296 = vmatpush.msra.mxu0 0.0
    %1297 = vmatpush.msra.mxu0 0.0
    %1298 = vmatpush.msra.mxu0 0.0
    %1299 = vmatpush.msra.mxu0 0.0
    %1300 = vmatpush.msra.mxu0 %v1184
    %1301 = vmatpush.msra.mxu0 %v1183
    %1302 = vmatmul.f32.gmra.mxu0 %v1284
    %v1303 = vpop.f32.mrf.mxu0
    %v1304 = vadd.f32 %v1187, %v1303
    %1305 = vdwg.mxu0
    %v1306 = vxor.u32 %v1304, 2147483648
    %v1307 = vmul.f32 %v1306, 1.442695
    %v1308 = vpow.pop %v1307
    %v1309 = vadd.f32 %v1308, 1.0
    %v1310 = vrcp.pop %v1309
    %v1311 = vmul.f32 %v1309, %v1310
    %v1312 = vsub.f32 1.0, %v1311
    %v1313 = vmul.f32 %v1310, %v1312
    %v1314 = vadd.f32 %v1310, %v1313
    %vm1315 = vweird.f32 %v1309
    %vm1316 = vweird.f32 %v1310
    %vm1317 = vmor %vm1315, %vm1316
    %v1318 = vsel %vm1317, %v1310, %v1314
    %v1319 = vand.u32 2147483647, %v1309
    %vm1320 = vcmp.eq.f32.partialorder %v1319, 8.507059e+37
    %v1321 = vand.u32 %v1309, 2147483648
    %v1322 = vor.u32 1.1754944e-38, %v1321
    %v1323 = vsel %vm1320, %v1322, %v1318
    %v1324 = vmul.f32 1.0, %v1323
    %v1325 = vld [vmem:[#allocation11] sm:$0xff]
    %v1326 = vld [vmem:[#allocation11 + $0x8] sm:$0xff]
    %v1327 = vld [vmem:[#allocation13] sm:$0x1]
    %v1329 = vperm.slane %v1327, 0
    %1331 = vmatpush.msra.mxu0 0.0
    %1332 = vmatpush.msra.mxu0 0.0
    %1333 = vmatpush.msra.mxu0 0.0
    %1334 = vmatpush.msra.mxu0 0.0
    %1335 = vmatpush.msra.mxu0 0.0
    %1336 = vmatpush.msra.mxu0 0.0
    %1337 = vmatpush.msra.mxu0 0.0
    %1338 = vmatpush.msra.mxu0 0.0
    %1339 = vmatpush.msra.mxu0 0.0
    %1340 = vmatpush.msra.mxu0 0.0
    %1341 = vmatpush.msra.mxu0 0.0
    %1342 = vmatpush.msra.mxu0 0.0
    %1343 = vmatpush.msra.mxu0 0.0
    %1344 = vmatpush.msra.mxu0 0.0
    %1345 = vmatpush.msra.mxu0 %v1326
    %1346 = vmatpush.msra.mxu0 %v1325
    %1347 = vmatmul.f32.gmra.mxu0 %v1284
    %v1348 = vpop.f32.mrf.mxu0
    %v1349 = vadd.f32 %v1329, %v1348
    %1350 = vdwg.mxu0
    %v1351 = vtanh.pop %v1349
    %v1352 = vld [vmem:[%s11] sm:$0xff]
    %v1353 = vld [vmem:[%s11 + $0x8] sm:$0xff]
    %v1354 = vld [vmem:[%s12] sm:$0x1]
    %v1356 = vperm.slane %v1354, 0
    %1358 = vmatpush.msra.mxu0 0.0
    %1359 = vmatpush.msra.mxu0 0.0
    %1360 = vmatpush.msra.mxu0 0.0
    %1361 = vmatpush.msra.mxu0 0.0
    %1362 = vmatpush.msra.mxu0 0.0
    %1363 = vmatpush.msra.mxu0 0.0
    %1364 = vmatpush.msra.mxu0 0.0
    %1365 = vmatpush.msra.mxu0 0.0
    %1366 = vmatpush.msra.mxu0 0.0
    %1367 = vmatpush.msra.mxu0 0.0
    %1368 = vmatpush.msra.mxu0 0.0
    %1369 = vmatpush.msra.mxu0 0.0
    %1370 = vmatpush.msra.mxu0 0.0
    %1371 = vmatpush.msra.mxu0 0.0
    %1372 = vmatpush.msra.mxu0 %v1353
    %1373 = vmatpush.msra.mxu0 %v1352
    %1374 = vmatmul.f32.gmra.mxu0 %v1284
    %v1375 = vpop.f32.mrf.mxu0
    %v1376 = vadd.f32 %v1356, %v1375
    %1377 = vdwg.mxu0
    %v1378 = vxor.u32 %v1376, 2147483648
    %v1379 = vmul.f32 %v1378, 1.442695
    %v1380 = vpow.pop %v1379
    %v1381 = vadd.f32 %v1380, 1.0
    %v1382 = vrcp.pop %v1381
    %v1383 = vmul.f32 %v1381, %v1382
    %v1384 = vsub.f32 1.0, %v1383
    %v1385 = vmul.f32 %v1382, %v1384
    %v1386 = vadd.f32 %v1382, %v1385
    %vm1387 = vweird.f32 %v1381
    %vm1388 = vweird.f32 %v1382
    %vm1389 = vmor %vm1387, %vm1388
    %v1390 = vsel %vm1389, %v1382, %v1386
    %v1391 = vand.u32 2147483647, %v1381
    %vm1392 = vcmp.eq.f32.partialorder %v1391, 8.507059e+37
    %v1393 = vand.u32 %v1381, 2147483648
    %v1394 = vor.u32 1.1754944e-38, %v1393
    %v1395 = vsel %vm1392, %v1394, %v1390
    %v1396 = vmul.f32 1.0, %v1395
    %v1397 = vmul.f32 %v1324, %v1351
    %v1398 = vtanh.pop %v1397
    %v1399 = vmul.f32 %v1396, %v1398
    %v1400 = vtanh.pop %v1399
    %v1401 = vld [vmem:[%s13] sm:$0xff]
    %v1402 = vld [vmem:[%s13 + $0x8] sm:$0xff]
    %v1403 = vld [vmem:[%s13 + $0x10] sm:$0xff]
    %v1404 = vld [vmem:[%s13 + $0x18] sm:$0xff]
    %v1405 = vld [vmem:[%s13 + $0x20] sm:$0xff]
    %v1406 = vld [vmem:[%s13 + $0x28] sm:$0xff]
    %v1407 = vld [vmem:[%s13 + $0x30] sm:$0xff]
    %v1408 = vld [vmem:[%s13 + $0x38] sm:$0xff]
    %v1409 = vld [vmem:[#allocation2] sm:$0x1]
    %v1411 = vperm.slane %v1409, 0
    %vm1413 = vcmask 523264
    %v1415 = vsel %vm1413, %v1400, 0
    %1417 = vmatpush.msra.mxu0 0.0
    %1418 = vmatpush.msra.mxu0 0.0
    %1419 = vmatpush.msra.mxu0 0.0
    %1420 = vmatpush.msra.mxu0 0.0
    %1421 = vmatpush.msra.mxu0 0.0
    %1422 = vmatpush.msra.mxu0 0.0
    %1423 = vmatpush.msra.mxu0 0.0
    %1424 = vmatpush.msra.mxu0 0.0
    %1425 = vmatpush.msra.mxu0 %v1408
    %1426 = vmatpush.msra.mxu0 %v1407
    %1427 = vmatpush.msra.mxu0 %v1406
    %1428 = vmatpush.msra.mxu0 %v1405
    %1429 = vmatpush.msra.mxu0 %v1404
    %1430 = vmatpush.msra.mxu0 %v1403
    %1431 = vmatpush.msra.mxu0 %v1402
    %1432 = vmatpush.msra.mxu0 %v1401
    %1433 = vmatmul.f32.gmra.mxu0 %v1415
    %v1434 = vpop.f32.mrf.mxu0
    %v1435 = vadd.f32 %v1411, %v1434
    %1436 = vdwg.mxu0
    %v1437 = vtanh.pop %v1435
    %vm1438 = vcmask 7168
    %1439 = vst.msk [vmem:[%s15] sm:$0xff] %vm1438, %v1437
    // Predicated region
    $region90: #{tpu_custom_call.1} parent=1 // pred_check
      _
    $region91: #{tpu_custom_call.1} parent=1 // pred_check_branch
      %1441 = sbr.rel (0) target = $region93
    $region92: #{tpu_custom_call.1} parent=1 // pred_region
      _
    $region93: #{tpu_custom_call.1} parent=1 // pred_fallthru
      _
    // Predicated region
    $region94: #{tpu_custom_call.1} parent=1 // pred_check
      _
    $region95: #{tpu_custom_call.1} parent=1 // pred_check_branch
      %1443 = sbr.rel (0) target = $region97
    $region96: #{tpu_custom_call.1} parent=1 // pred_region
      _
    $region97: #{tpu_custom_call.1} parent=1 // pred_fallthru
      _
    %1444 = vsyncpa [#allocation4], 1
    %1445 = vsyncpa [#allocation6], 1
    %1446 = vsyncpa [#allocation9], 1
    %1447 = vsyncpa [#allocation12], 1

</llo_original>
